<compile_context>
chip_gen: v7x
topology: tpu7x:2x2x1
jax: 0.10.0
libtpu: 0.0.40
codegen_flags: <defaults>
</compile_context>

<pallas_src>
import jax
import jax.numpy as jnp
from jax.experimental import pallas as pl
from jax.experimental.pallas import tpu as pltpu

HIDDEN = 256
BN_EPS = 1e-5


def critic_kernel(state_ref, action_ref,
                  w14_ref, w25s_ref, w25a_ref, w36_ref,
                  vec_ref,
                  q_ref):
    # Activations cast to bf16 only at the matmul inputs; everything else f32.
    state = state_ref[...].astype(jnp.bfloat16)
    action = action_ref[...].astype(jnp.bfloat16)

    # Packed small vectors (static row slices of one (5, 512) array).
    b14 = vec_ref[0:1, :]          # [b1 | b4]
    g14 = vec_ref[1:2, :]          # [gamma1 | gamma4]
    be14 = vec_ref[2:3, :]         # [beta1  | beta4 ]
    b25 = vec_ref[3:4, :]          # [b2 | b5]
    b36 = vec_ref[4:5, 0:2]        # [b3, b6]

    # ---- Layer 1, both heads fused along the output (lane) dim ----
    h14 = jnp.dot(state, w14_ref[...],
                  preferred_element_type=jnp.float32) + b14      # (B, 512)

    # BatchNorm1d (training mode): per-column batch mean / biased variance.
    mean = jnp.mean(h14, axis=0, keepdims=True)
    cen = h14 - mean
    var = jnp.mean(cen * cen, axis=0, keepdims=True)
    s_full = jnp.maximum(g14 * cen * jax.lax.rsqrt(var + BN_EPS) + be14, 0.0)

    # ---- Layer 2: block-diag state path + fused action path ----
    h = (jnp.dot(s_full.astype(jnp.bfloat16), w25s_ref[...],
                 preferred_element_type=jnp.float32)
         + jnp.dot(action, w25a_ref[...],
                   preferred_element_type=jnp.float32)
         + b25)                                                   # (B, 512)
    h = jnp.maximum(h, 0.0)

    # ---- Output layer: block-diag (512, 2); col 0 = Q1, col 1 = Q2 ----
    q_ref[...] = (jnp.dot(h.astype(jnp.bfloat16), w36_ref[...],
                          preferred_element_type=jnp.float32)
                  + b36)


def critic_forward(state, action, packed):
    """Returns (q1, q2), each (B, 1) float32."""
    B = state.shape[0]
    w14, w25s, w25a, w36, vecs = packed
    vmem = pl.BlockSpec(memory_space=pltpu.MemorySpace.VMEM)
    q = pl.pallas_call(
        critic_kernel,
        out_shape=jax.ShapeDtypeStruct((B, 2), jnp.float32),
        in_specs=[vmem] * 7,
        out_specs=vmem,
    )(state, action, w14, w25s, w25a, w36, vecs)
    return q[:, 0:1], q[:, 1:2]


def init_params(key, state_dim, action_dim):
    """PyTorch-style Linear init (U[-1/sqrt(fan_in), 1/sqrt(fan_in)]);
    BatchNorm gamma=1, beta=0.  Weights stored as [in, out] (transposed)."""
    def linear(key, fan_in, fan_out):
        k1, k2 = jax.random.split(key)
        bound = 1.0 / jnp.sqrt(fan_in)
        w = jax.random.uniform(k1, (fan_in, fan_out), jnp.float32, -bound, bound)
        b = jax.random.uniform(k2, (1, fan_out), jnp.float32, -bound, bound)
        return w, b

    keys = jax.random.split(key, 6)
    w1, b1 = linear(keys[0], state_dim, HIDDEN)
    w2, b2 = linear(keys[1], HIDDEN + action_dim, HIDDEN)
    w3, b3 = linear(keys[2], HIDDEN, 1)
    w4, b4 = linear(keys[3], state_dim, HIDDEN)
    w5, b5 = linear(keys[4], HIDDEN + action_dim, HIDDEN)
    w6, b6 = linear(keys[5], HIDDEN, 1)

    g1 = jnp.ones((1, HIDDEN), jnp.float32)
    be1 = jnp.zeros((1, HIDDEN), jnp.float32)
    g4 = jnp.ones((1, HIDDEN), jnp.float32)
    be4 = jnp.zeros((1, HIDDEN), jnp.float32)

    # Split the concat-matmul weights: rows [:HIDDEN] act on s, [HIDDEN:] on action.
    w2s, w2a = w2[:HIDDEN], w2[HIDDEN:]
    w5s, w5a = w5[:HIDDEN], w5[HIDDEN:]

    return (w1, b1, g1, be1,
            w2s, w2a, b2,
            w3, b3,
            w4, b4, g4, be4,
            w5s, w5a, b5,
            w6, b6)


def pack_params(params):
    """Fuse the two heads' parameters into 5 kernel inputs (weights in bf16)."""
    (w1, b1, g1, be1, w2s, w2a, b2, w3, b3,
     w4, b4, g4, be4, w5s, w5a, b5, w6, b6) = params
    H = HIDDEN

    w14 = jnp.concatenate([w1, w4], axis=1).astype(jnp.bfloat16)        # (S, 512)

    w25s = jnp.zeros((2 * H, 2 * H), jnp.float32)
    w25s = w25s.at[:H, :H].set(w2s).at[H:, H:].set(w5s)
    w25s = w25s.astype(jnp.bfloat16)                                    # (512, 512)

    w25a = jnp.concatenate([w2a, w5a], axis=1).astype(jnp.bfloat16)     # (A, 512)

    w36 = jnp.zeros((2 * H, 2), jnp.float32)
    w36 = w36.at[:H, 0:1].set(w3).at[H:, 1:2].set(w6)
    w36 = w36.astype(jnp.bfloat16)                                      # (512, 2)

    b36_row = jnp.zeros((1, 2 * H), jnp.float32)
    b36_row = b36_row.at[0, 0].set(b3[0, 0]).at[0, 1].set(b6[0, 0])

    vecs = jnp.concatenate([
        jnp.concatenate([b1, b4], axis=1),
        jnp.concatenate([g1, g4], axis=1),
        jnp.concatenate([be1, be4], axis=1),
        jnp.concatenate([b2, b5], axis=1),
        b36_row,
    ], axis=0)                                                          # (5, 512) f32

    return (w14, w25s, w25a, w36, vecs)


def reference_forward(state, action, params):
    """Unfused f32 reference matching the PyTorch module (training-mode BN)."""
    (w1, b1, g1, be1, w2s, w2a, b2, w3, b3,
     w4, b4, g4, be4, w5s, w5a, b5, w6, b6) = params

    def bn(x, g, bt):
        m = jnp.mean(x, axis=0, keepdims=True)
        v = jnp.mean((x - m) ** 2, axis=0, keepdims=True)
        return g * (x - m) / jnp.sqrt(v + BN_EPS) + bt

    s1 = jax.nn.relu(bn(state @ w1 + b1, g1, be1))
    q1 = jax.nn.relu(s1 @ w2s + action @ w2a + b2) @ w3 + b3
    s2 = jax.nn.relu(bn(state @ w4 + b4, g4, be4))
    q2 = jax.nn.relu(s2 @ w5s + action @ w5a + b5) @ w6 + b6
    return q1, q2


if __name__ == "__main__":
    B, STATE_DIM, ACTION_DIM = 8, 16, 8

    key = jax.random.PRNGKey(0)
    k_state, k_action, k_params = jax.random.split(key, 3)
    state = jax.random.normal(k_state, (B, STATE_DIM), jnp.float32)
    action = jax.random.normal(k_action, (B, ACTION_DIM), jnp.float32)
    params = init_params(k_params, STATE_DIM, ACTION_DIM)
    packed = pack_params(params)

    # TODO(synk): BatchNorm1d training mode also mutates running_mean/var in
    # PyTorch; this pure forward kernel intentionally does not emit them.

    q1, q2 = critic_forward(state, action, packed)
    q1 = jax.block_until_ready(q1)
    q2 = jax.block_until_ready(q2)

    r1, r2 = reference_forward(state, action, params)
    assert q1.shape == (B, 1) and q2.shape == (B, 1)
    # bf16 weights/activations vs f32 reference -> ~1e-2-level drift expected.
    assert jnp.allclose(q1, r1, atol=5e-2, rtol=5e-2)
    assert jnp.allclose(q2, r2, atol=5e-2, rtol=5e-2)

    print("KERNEL_OK")
</pallas_src>

<mosaic_0001>
module attributes {stable_mosaic.version = 11 : i64} {
  func.func @critic_kernel(%arg0: memref<8x16xf32, #tpu.memory_space<vmem>>, %arg1: memref<8x8xf32, #tpu.memory_space<vmem>>, %arg2: memref<16x512xbf16, #tpu.memory_space<vmem>>, %arg3: memref<512x512xbf16, #tpu.memory_space<vmem>>, %arg4: memref<8x512xbf16, #tpu.memory_space<vmem>>, %arg5: memref<512x2xbf16, #tpu.memory_space<vmem>>, %arg6: memref<5x512xf32, #tpu.memory_space<vmem>>, %arg7: memref<8x2xf32, #tpu.memory_space<vmem>>) attributes {dimension_semantics = [], scalar_prefetch = 0 : i64, scratch_operands = 0 : i64, tpu.core_type = #tpu.core_type<tc>} {
    %c0 = arith.constant 0 : index
    %c0_0 = arith.constant 0 : index
    %0 = vector.load %arg0[%c0, %c0_0] : memref<8x16xf32, #tpu.memory_space<vmem>>, vector<8x16xf32>
    %1 = arith.truncf %0 : vector<8x16xf32> to vector<8x16xbf16>
    %c0_1 = arith.constant 0 : index
    %c0_2 = arith.constant 0 : index
    %2 = vector.load %arg1[%c0_1, %c0_2] : memref<8x8xf32, #tpu.memory_space<vmem>>, vector<8x8xf32>
    %3 = arith.truncf %2 : vector<8x8xf32> to vector<8x8xbf16>
    %c0_3 = arith.constant 0 : index
    %c0_4 = arith.constant 0 : index
    %4 = vector.load %arg6[%c0_3, %c0_4] : memref<5x512xf32, #tpu.memory_space<vmem>>, vector<1x512xf32>
    %c1 = arith.constant 1 : index
    %c0_5 = arith.constant 0 : index
    %5 = vector.load %arg6[%c1, %c0_5] : memref<5x512xf32, #tpu.memory_space<vmem>>, vector<1x512xf32>
    %c2 = arith.constant 2 : index
    %c0_6 = arith.constant 0 : index
    %6 = vector.load %arg6[%c2, %c0_6] : memref<5x512xf32, #tpu.memory_space<vmem>>, vector<1x512xf32>
    %c3 = arith.constant 3 : index
    %c0_7 = arith.constant 0 : index
    %7 = vector.load %arg6[%c3, %c0_7] : memref<5x512xf32, #tpu.memory_space<vmem>>, vector<1x512xf32>
    %c4 = arith.constant 4 : index
    %c0_8 = arith.constant 0 : index
    %8 = vector.load %arg6[%c4, %c0_8] : memref<5x512xf32, #tpu.memory_space<vmem>>, vector<1x2xf32>
    %c0_9 = arith.constant 0 : index
    %c0_10 = arith.constant 0 : index
    %9 = vector.load %arg2[%c0_9, %c0_10] : memref<16x512xbf16, #tpu.memory_space<vmem>>, vector<16x512xbf16>
    %cst = arith.constant dense<0.000000e+00> : vector<8x512xf32>
    %10 = tpu.matmul %1, %9, %cst {dimension_numbers = #tpu.dot_dimension_numbers<[1], [0], [0], [1], [0, 0, 1, 1], [], []>} : vector<8x16xbf16>, vector<16x512xbf16>, vector<8x512xf32> -> vector<8x512xf32>
    %11 = vector.broadcast %4 : vector<1x512xf32> to vector<8x512xf32>
    %12 = arith.addf %10, %11 : vector<8x512xf32>
    %cst_11 = arith.constant dense<0.000000e+00> : vector<512xf32>
    %13 = vector.multi_reduction <add>, %12, %cst_11 [0] : vector<8x512xf32> to vector<512xf32>
    %14 = vector.shape_cast %13 : vector<512xf32> to vector<1x512xf32>
    %cst_12 = arith.constant 8.000000e+00 : f32
    %15 = vector.broadcast %cst_12 : f32 to vector<1x512xf32>
    %16 = arith.divf %14, %15 : vector<1x512xf32>
    %17 = vector.broadcast %16 : vector<1x512xf32> to vector<8x512xf32>
    %18 = arith.subf %12, %17 : vector<8x512xf32>
    %19 = arith.mulf %18, %18 : vector<8x512xf32>
    %cst_13 = arith.constant dense<0.000000e+00> : vector<512xf32>
    %20 = vector.multi_reduction <add>, %19, %cst_13 [0] : vector<8x512xf32> to vector<512xf32>
    %21 = vector.shape_cast %20 : vector<512xf32> to vector<1x512xf32>
    %cst_14 = arith.constant 8.000000e+00 : f32
    %22 = vector.broadcast %cst_14 : f32 to vector<1x512xf32>
    %23 = arith.divf %21, %22 : vector<1x512xf32>
    %24 = vector.broadcast %5 : vector<1x512xf32> to vector<8x512xf32>
    %25 = arith.mulf %24, %18 : vector<8x512xf32>
    %cst_15 = arith.constant 9.99999974E-6 : f32
    %26 = vector.broadcast %cst_15 : f32 to vector<1x512xf32>
    %27 = arith.addf %23, %26 : vector<1x512xf32>
    %28 = math.rsqrt %27 : vector<1x512xf32>
    %29 = vector.broadcast %28 : vector<1x512xf32> to vector<8x512xf32>
    %30 = arith.mulf %25, %29 : vector<8x512xf32>
    %31 = vector.broadcast %6 : vector<1x512xf32> to vector<8x512xf32>
    %32 = arith.addf %30, %31 : vector<8x512xf32>
    %cst_16 = arith.constant 0.000000e+00 : f32
    %33 = vector.broadcast %cst_16 : f32 to vector<8x512xf32>
    %34 = arith.maximumf %32, %33 : vector<8x512xf32>
    %35 = arith.truncf %34 : vector<8x512xf32> to vector<8x512xbf16>
    %c0_17 = arith.constant 0 : index
    %c0_18 = arith.constant 0 : index
    %36 = vector.load %arg3[%c0_17, %c0_18] : memref<512x512xbf16, #tpu.memory_space<vmem>>, vector<512x512xbf16>
    %cst_19 = arith.constant dense<0.000000e+00> : vector<8x512xf32>
    %37 = tpu.matmul %35, %36, %cst_19 {dimension_numbers = #tpu.dot_dimension_numbers<[1], [0], [0], [1], [0, 0, 1, 1], [], []>} : vector<8x512xbf16>, vector<512x512xbf16>, vector<8x512xf32> -> vector<8x512xf32>
    %c0_20 = arith.constant 0 : index
    %c0_21 = arith.constant 0 : index
    %38 = vector.load %arg4[%c0_20, %c0_21] : memref<8x512xbf16, #tpu.memory_space<vmem>>, vector<8x512xbf16>
    %cst_22 = arith.constant dense<0.000000e+00> : vector<8x512xf32>
    %39 = tpu.matmul %3, %38, %cst_22 {dimension_numbers = #tpu.dot_dimension_numbers<[1], [0], [0], [1], [0, 0, 1, 1], [], []>} : vector<8x8xbf16>, vector<8x512xbf16>, vector<8x512xf32> -> vector<8x512xf32>
    %40 = arith.addf %37, %39 : vector<8x512xf32>
    %41 = vector.broadcast %7 : vector<1x512xf32> to vector<8x512xf32>
    %42 = arith.addf %40, %41 : vector<8x512xf32>
    %cst_23 = arith.constant 0.000000e+00 : f32
    %43 = vector.broadcast %cst_23 : f32 to vector<8x512xf32>
    %44 = arith.maximumf %42, %43 : vector<8x512xf32>
    %45 = arith.truncf %44 : vector<8x512xf32> to vector<8x512xbf16>
    %c0_24 = arith.constant 0 : index
    %c0_25 = arith.constant 0 : index
    %46 = vector.load %arg5[%c0_24, %c0_25] : memref<512x2xbf16, #tpu.memory_space<vmem>>, vector<512x2xbf16>
    %cst_26 = arith.constant dense<0.000000e+00> : vector<8x2xf32>
    %47 = tpu.matmul %45, %46, %cst_26 {dimension_numbers = #tpu.dot_dimension_numbers<[1], [0], [0], [1], [0, 0, 1, 1], [], []>} : vector<8x512xbf16>, vector<512x2xbf16>, vector<8x2xf32> -> vector<8x2xf32>
    %48 = vector.broadcast %8 : vector<1x2xf32> to vector<8x2xf32>
    %49 = arith.addf %47, %48 : vector<8x2xf32>
    %c0_27 = arith.constant 0 : index
    %c0_28 = arith.constant 0 : index
    %50 = vector.load %arg7[%c0_27, %c0_28] : memref<8x2xf32, #tpu.memory_space<vmem>>, vector<8x2xf32>
    tpu.vector_store %arg7[%c0_27, %c0_28], %49 {strides = array<i32>} : memref<8x2xf32, #tpu.memory_space<vmem>>, vector<8x2xf32>,
    return
  }
}

</mosaic_0001>

<llo_original>
// kernel: tpu_custom_call.1
$region0: #{tpu_custom_call.1}
  #allocation0 [shape = 'u32[]', space=smem, size = 0x4, offset = 0x4, fixed_abs, tag = 'smem constant byte address 0x4 - core index']
  #allocation1 [shape = 'u32[144,128]{1,0:T(1,128)}', space=vmem, size = 0x12000, scoped, tag = 'internal scratch']
  %s0 = inlined_call_operand.vmem [shape: f32[8,16], index: 0, kind: input, shape index: {}]
  %s1 = inlined_call_operand.vmem [shape: f32[8,8], index: 1, kind: input, shape index: {}]
  %s2 = inlined_call_operand.vmem [shape: bf16[16,512], index: 2, kind: input, shape index: {}]
  %s3 = inlined_call_operand.hbm [shape: bf16[512,512], index: 3, kind: input, shape index: {}]
  %s4 = inlined_call_operand.vmem [shape: bf16[8,512], index: 4, kind: input, shape index: {}]
  %s5 = inlined_call_operand.vmem [shape: bf16[512,2], index: 5, kind: input, shape index: {}]
  %s6 = inlined_call_operand.vmem [shape: f32[5,512], index: 6, kind: input, shape index: {}]
  %s7 = inlined_call_operand.vmem [shape: f32[8,2], index: 7, kind: output, shape index: {}]
  %s8 = sld [smem:[#allocation0]]
  $region42: #{tpu_custom_call.1} parent=0
    _
  %s10 = ssub.s32 1, %s8
  %s11 = scalar_select 0, %s10, %s8
  $region1: #{tpu_custom_call.1} parent=0
    #allocation2 [shape = 'u8[524288]{0}', space=vmem, size = 0x80000, scoped, tag = 'input window, operand 3, single buffered']
    #allocation3 [shape = 's32[1]{0}', space=sflag, size = 0x4, scoped, tag = 'scoped memory for tpu_custom_call.1']
    %12 = vsyncpa [#allocation3], 0
    // Predicated region
    $region2: #{tpu_custom_call.1} parent=1 // pred_check
      _
    $region3: #{tpu_custom_call.1} parent=1 // pred_check_branch
      %14 = sbr.rel (0) target = $region5
    $region4: #{tpu_custom_call.1} parent=1 // pred_region
      _
    $region5: #{tpu_custom_call.1} parent=1 // pred_fallthru
      _
    // Predicated region
    $region6: #{tpu_custom_call.1} parent=1 // pred_check
      _
    $region7: #{tpu_custom_call.1} parent=1 // pred_check_branch
      %16 = sbr.rel (0) target = $region9
    $region8: #{tpu_custom_call.1} parent=1 // pred_region
      _
    $region9: #{tpu_custom_call.1} parent=1 // pred_fallthru
      _
    // Predicated region
    $region10: #{tpu_custom_call.1} parent=1 // pred_check
      _
    $region11: #{tpu_custom_call.1} parent=1 // pred_check_branch
      %18 = sbr.rel (0) target = $region13
    $region12: #{tpu_custom_call.1} parent=1 // pred_region
      _
    $region13: #{tpu_custom_call.1} parent=1 // pred_fallthru
      _
    // Predicated region
    $region14: #{tpu_custom_call.1} parent=1 // pred_check
      _
    $region15: #{tpu_custom_call.1} parent=1 // pred_check_branch
      %20 = sbr.rel (0) target = $region17
    $region16: #{tpu_custom_call.1} parent=1 // pred_region
      %s22 = ssub.s32 16384, 16384
      %23 = vsyncadd [#allocation3], %s22
      %s24 = sshll.u32 [#allocation2], 4
      %s25 = int_to_ptr.vmem [resolvable:$true] %s24
      %30 = dma.hbm_to_vmem [thread:$0]  %s3, 16384, %s25, [#allocation3], 256, 256, 16
    $region17: #{tpu_custom_call.1} parent=1 // pred_fallthru
      _
    // Predicated region
    $region18: #{tpu_custom_call.1} parent=1 // pred_check
      _
    $region19: #{tpu_custom_call.1} parent=1 // pred_check_branch
      %32 = sbr.rel (0) target = $region21
    $region20: #{tpu_custom_call.1} parent=1 // pred_region
      _
    $region21: #{tpu_custom_call.1} parent=1 // pred_fallthru
      _
    // Predicated region
    $region22: #{tpu_custom_call.1} parent=1 // pred_check
      _
    $region23: #{tpu_custom_call.1} parent=1 // pred_check_branch
      %34 = sbr.rel (0) target = $region25
    $region24: #{tpu_custom_call.1} parent=1 // pred_region
      _
    $region25: #{tpu_custom_call.1} parent=1 // pred_fallthru
      _
    // Predicated region
    $region26: #{tpu_custom_call.1} parent=1 // pred_check
      _
    $region27: #{tpu_custom_call.1} parent=1 // pred_check_branch
      %36 = sbr.rel (0) target = $region29
    $region28: #{tpu_custom_call.1} parent=1 // pred_region
      _
    $region29: #{tpu_custom_call.1} parent=1 // pred_fallthru
      _
    // Predicated region
    $region30: #{tpu_custom_call.1} parent=1 // pred_check
      _
    $region31: #{tpu_custom_call.1} parent=1 // pred_check_branch
      %38 = sbr.rel (0) target = $region33
    $region32: #{tpu_custom_call.1} parent=1 // pred_region
      %39 = dma.done [#allocation3], 16384
    $region33: #{tpu_custom_call.1} parent=1 // pred_fallthru
      _
    %v41 = vld [vmem:[%s0] sm:$0xff]
    %v42 = vpack.c.bf16 %v41, %v41
    %v43 = vld [vmem:[%s1] sm:$0xff]
    %v44 = vpack.c.bf16 %v43, %v43
    %v45 = vld [vmem:[%s6] ss:$8 sm:$0xf]
    %s46 = scalar_lea.vmem %s6, 1
    %v47 = vld [vmem:[%s46] ss:$8 sm:$0xf]
    %s48 = scalar_lea.vmem %s6, 2
    %v49 = vld [vmem:[%s48] ss:$8 sm:$0xf]
    %s50 = scalar_lea.vmem %s6, 3
    %v51 = vld [vmem:[%s50] ss:$8 sm:$0xf]
    %v52 = vld [vmem:[%s6 + $0x4] ss:$0 sm:$0xff]
    %v53 = vld [vmem:[%s2] sm:$0xff]
    %v54 = vld [vmem:[%s2 + $0x8] sm:$0xff]
    %v55 = vld [vmem:[%s2 + $0x10] sm:$0xff]
    %v56 = vld [vmem:[%s2 + $0x18] sm:$0xff]
    %v58 = vlaneseq
    %v59 = vshrl.u32 %v58, 7
    %v60 = vsub.s32 0, %v59
    %v61 = vrot.slane %v45, %v60
    %v62 = vlaneseq
    %v63 = vshrl.u32 %v62, 7
    %v64 = vsub.s32 1, %v63
    %v65 = vrot.slane %v45, %v64
    %v66 = vlaneseq
    %v67 = vshrl.u32 %v66, 7
    %v68 = vsub.s32 2, %v67
    %v69 = vrot.slane %v45, %v68
    %v70 = vlaneseq
    %v71 = vshrl.u32 %v70, 7
    %v72 = vsub.s32 3, %v71
    %v73 = vrot.slane %v45, %v72
    %v82 = vunpack.c.l.b16 %v53
    %v83 = vunpack.c.h.b16 %v53
    %v84 = vunpack.c.l.b16 %v54
    %v85 = vunpack.c.h.b16 %v54
    %v86 = vunpack.c.l.b16 %v55
    %v87 = vunpack.c.h.b16 %v55
    %v88 = vunpack.c.l.b16 %v56
    %v89 = vunpack.c.h.b16 %v56
    %v90 = vpack.c.b16 %v86, %v82
    %v91 = vpack.c.b16 %v87, %v83
    %v92 = vpack.c.b16 %v88, %v84
    %v93 = vpack.c.b16 %v89, %v85
    %vm98 = vcmask 130048
    %v100 = vsel %vm98, %v42, 0
    %102 = vmatprep.subr.bf16.mxu0 %v91
    %103 = vmatpush1.bf16.msra.mxu0 %v90
    %104 = vmatprep.subr.bf16.mxu0 0
    %105 = vmatpush1.bf16.msra.mxu0 0
    %106 = vmatprep.subr.bf16.mxu0 0
    %107 = vmatpush1.bf16.msra.mxu0 0
    %108 = vmatprep.subr.bf16.mxu0 0
    %109 = vmatpush1.bf16.msra.mxu0 0
    %110 = vmatprep.subr.bf16.mxu0 0
    %111 = vmatpush1.bf16.msra.mxu0 0
    %112 = vmatprep.subr.bf16.mxu0 0
    %113 = vmatpush1.bf16.msra.mxu0 0
    %114 = vmatprep.subr.bf16.mxu0 0
    %115 = vmatpush1.bf16.msra.mxu0 0
    %116 = vmatprep.subr.bf16.mxu0 0
    %117 = vmatpush1.bf16.msra.mxu0 0
    %118 = vmatprep.subr.bf16.mxu0 0
    %119 = vmatpush1.bf16.msra.mxu0 0
    %120 = vmatprep.subr.bf16.mxu0 0
    %121 = vmatpush1.bf16.msra.mxu0 0
    %122 = vmatprep.subr.bf16.mxu0 0
    %123 = vmatpush1.bf16.msra.mxu0 0
    %124 = vmatprep.subr.bf16.mxu0 0
    %125 = vmatpush1.bf16.msra.mxu0 0
    %126 = vmatprep.subr.bf16.mxu0 0
    %127 = vmatpush1.bf16.msra.mxu0 0
    %128 = vmatprep.subr.bf16.mxu0 0
    %129 = vmatpush1.bf16.msra.mxu0 0
    %130 = vmatprep.subr.bf16.mxu0 0
    %131 = vmatpush1.bf16.msra.mxu0 0
    %132 = vmatprep.subr.bf16.mxu0 0
    %133 = vmatpush1.bf16.msra.mxu0 0
    %134 = vmatprep.mubr.bf16.mxu0 0
    %135 = vmatmul.mubr.bf16.gmra.mrb[0].mxu0 %v100
    %v136 = vpop.f32.mrb[0].mxu0
    %v137 = vadd.f32 %v61, %v136
    %v138 = vpop.f32.mrb[0].mxu0
    %v139 = vadd.f32 %v65, %v138
    %v140 = vpop.f32.mrb[0].mxu0
    %v141 = vpop.f32.mrb[0].mxu0
    %142 = vdwg.mxu0
    %143 = vmatprep.subr.bf16.mxu0 %v93
    %144 = vmatpush1.bf16.msra.mxu0 %v92
    %145 = vmatprep.subr.bf16.mxu0 0
    %146 = vmatpush1.bf16.msra.mxu0 0
    %147 = vmatprep.subr.bf16.mxu0 0
    %148 = vmatpush1.bf16.msra.mxu0 0
    %149 = vmatprep.subr.bf16.mxu0 0
    %150 = vmatpush1.bf16.msra.mxu0 0
    %151 = vmatprep.subr.bf16.mxu0 0
    %152 = vmatpush1.bf16.msra.mxu0 0
    %153 = vmatprep.subr.bf16.mxu0 0
    %154 = vmatpush1.bf16.msra.mxu0 0
    %155 = vmatprep.subr.bf16.mxu0 0
    %156 = vmatpush1.bf16.msra.mxu0 0
    %157 = vmatprep.subr.bf16.mxu0 0
    %158 = vmatpush1.bf16.msra.mxu0 0
    %159 = vmatprep.subr.bf16.mxu0 0
    %160 = vmatpush1.bf16.msra.mxu0 0
    %161 = vmatprep.subr.bf16.mxu0 0
    %162 = vmatpush1.bf16.msra.mxu0 0
    %163 = vmatprep.subr.bf16.mxu0 0
    %164 = vmatpush1.bf16.msra.mxu0 0
    %165 = vmatprep.subr.bf16.mxu0 0
    %166 = vmatpush1.bf16.msra.mxu0 0
    %167 = vmatprep.subr.bf16.mxu0 0
    %168 = vmatpush1.bf16.msra.mxu0 0
    %169 = vmatprep.subr.bf16.mxu0 0
    %170 = vmatpush1.bf16.msra.mxu0 0
    %171 = vmatprep.subr.bf16.mxu0 0
    %172 = vmatpush1.bf16.msra.mxu0 0
    %173 = vmatprep.subr.bf16.mxu0 0
    %174 = vmatpush1.bf16.msra.mxu0 0
    %175 = vmatprep.mubr.bf16.mxu0 0
    %176 = vmatmul.mubr.bf16.gmra.mrb[0].mxu0 %v100
    %v177 = vpop.f32.mrb[0].mxu0
    %v178 = vadd.f32 %v69, %v177
    %v179 = vpop.f32.mrb[0].mxu0
    %v180 = vadd.f32 %v73, %v179
    %v181 = vpop.f32.mrb[0].mxu0
    %v182 = vpop.f32.mrb[0].mxu0
    %183 = vdwg.mxu0
    %v184 = vrot.slane %v137, 4
    %v185 = vadd.f32 %v137, %v184
    %v186 = vrot.slane %v185, 2
    %v187 = vadd.f32 %v185, %v186
    %v188 = vrot.slane %v187, 1
    %v189 = vadd.f32 %v187, %v188
    %v190 = vrot.slane %v139, 4
    %v191 = vadd.f32 %v139, %v190
    %v192 = vrot.slane %v191, 2
    %v193 = vadd.f32 %v191, %v192
    %v194 = vrot.slane %v193, 1
    %v195 = vadd.f32 %v193, %v194
    %v196 = vrot.slane %v178, 4
    %v197 = vadd.f32 %v178, %v196
    %v198 = vrot.slane %v197, 2
    %v199 = vadd.f32 %v197, %v198
    %v200 = vrot.slane %v199, 1
    %v201 = vadd.f32 %v199, %v200
    %v202 = vrot.slane %v180, 4
    %v203 = vadd.f32 %v180, %v202
    %v204 = vrot.slane %v203, 2
    %v205 = vadd.f32 %v203, %v204
    %v206 = vrot.slane %v205, 1
    %v207 = vadd.f32 %v205, %v206
    %v208 = vrcp.pop 8.0
    %v209 = vmul.f32 %v189, %v208
    %v210 = vmul.f32 %v195, %v208
    %v211 = vmul.f32 %v201, %v208
    %v212 = vmul.f32 %v207, %v208
    %v213 = vsub.f32 %v137, %v209
    %v214 = vsub.f32 %v139, %v210
    %v215 = vsub.f32 %v178, %v211
    %v216 = vsub.f32 %v180, %v212
    %v217 = vmul.f32 %v213, %v213
    %v218 = vmul.f32 %v214, %v214
    %v219 = vmul.f32 %v215, %v215
    %v220 = vmul.f32 %v216, %v216
    %v221 = vrot.slane %v217, 4
    %v222 = vadd.f32 %v217, %v221
    %v223 = vrot.slane %v222, 2
    %v224 = vadd.f32 %v222, %v223
    %v225 = vrot.slane %v224, 1
    %v226 = vadd.f32 %v224, %v225
    %v227 = vrot.slane %v218, 4
    %v228 = vadd.f32 %v218, %v227
    %v229 = vrot.slane %v228, 2
    %v230 = vadd.f32 %v228, %v229
    %v231 = vrot.slane %v230, 1
    %v232 = vadd.f32 %v230, %v231
    %v233 = vrot.slane %v219, 4
    %v234 = vadd.f32 %v219, %v233
    %v235 = vrot.slane %v234, 2
    %v236 = vadd.f32 %v234, %v235
    %v237 = vrot.slane %v236, 1
    %v238 = vadd.f32 %v236, %v237
    %v239 = vrot.slane %v220, 4
    %v240 = vadd.f32 %v220, %v239
    %v241 = vrot.slane %v240, 2
    %v242 = vadd.f32 %v240, %v241
    %v243 = vrot.slane %v242, 1
    %v244 = vadd.f32 %v242, %v243
    %v245 = vmul.f32 %v226, %v208
    %v246 = vmul.f32 %v232, %v208
    %v247 = vmul.f32 %v238, %v208
    %v248 = vmul.f32 %v244, %v208
    %v250 = vlaneseq
    %v251 = vshrl.u32 %v250, 7
    %v252 = vsub.s32 0, %v251
    %v253 = vrot.slane %v47, %v252
    %v254 = vlaneseq
    %v255 = vshrl.u32 %v254, 7
    %v256 = vsub.s32 1, %v255
    %v257 = vrot.slane %v47, %v256
    %v258 = vlaneseq
    %v259 = vshrl.u32 %v258, 7
    %v260 = vsub.s32 2, %v259
    %v261 = vrot.slane %v47, %v260
    %v262 = vlaneseq
    %v263 = vshrl.u32 %v262, 7
    %v264 = vsub.s32 3, %v263
    %v265 = vrot.slane %v47, %v264
    %v270 = vmul.f32 %v253, %v213
    %v271 = vmul.f32 %v257, %v214
    %v272 = vmul.f32 %v261, %v215
    %v273 = vmul.f32 %v265, %v216
    %v274 = vadd.f32 %v245, 1e-05
    %v275 = vadd.f32 %v246, 1e-05
    %v276 = vadd.f32 %v247, 1e-05
    %v277 = vadd.f32 %v248, 1e-05
    %v278 = vrsqrt.pop %v274
    %v279 = vrsqrt.pop %v275
    %v280 = vrsqrt.pop %v276
    %v281 = vrsqrt.pop %v277
    %v282 = vmul.f32 %v270, %v278
    %v283 = vmul.f32 %v271, %v279
    %v284 = vmul.f32 %v272, %v280
    %v285 = vmul.f32 %v273, %v281
    %v287 = vlaneseq
    %v288 = vshrl.u32 %v287, 7
    %v289 = vsub.s32 0, %v288
    %v290 = vrot.slane %v49, %v289
    %v291 = vlaneseq
    %v292 = vshrl.u32 %v291, 7
    %v293 = vsub.s32 1, %v292
    %v294 = vrot.slane %v49, %v293
    %v295 = vlaneseq
    %v296 = vshrl.u32 %v295, 7
    %v297 = vsub.s32 2, %v296
    %v298 = vrot.slane %v49, %v297
    %v299 = vlaneseq
    %v300 = vshrl.u32 %v299, 7
    %v301 = vsub.s32 3, %v300
    %v302 = vrot.slane %v49, %v301
    %v307 = vadd.f32 %v282, %v290
    %v308 = vadd.f32 %v283, %v294
    %v309 = vadd.f32 %v284, %v298
    %v310 = vadd.f32 %v285, %v302
    %v311 = vmax.f32 %v307, 0.0
    %v312 = vmax.f32 %v308, 0.0
    %v313 = vmax.f32 %v309, 0.0
    %v314 = vmax.f32 %v310, 0.0
    %v315 = vpack.c.bf16 %v311, %v311
    %v316 = vpack.c.bf16 %v312, %v312
    %v317 = vpack.c.bf16 %v313, %v313
    %v318 = vpack.c.bf16 %v314, %v314
    %v319 = vld [vmem:[#allocation2] sm:$0xff]
    %v320 = vld [vmem:[#allocation2 + $0x8] sm:$0xff]
    %v321 = vld [vmem:[#allocation2 + $0x10] sm:$0xff]
    %v322 = vld [vmem:[#allocation2 + $0x18] sm:$0xff]
    %v323 = vld [vmem:[#allocation2 + $0x20] sm:$0xff]
    %v324 = vld [vmem:[#allocation2 + $0x28] sm:$0xff]
    %v325 = vld [vmem:[#allocation2 + $0x30] sm:$0xff]
    %v326 = vld [vmem:[#allocation2 + $0x38] sm:$0xff]
    %v327 = vld [vmem:[#allocation2 + $0x40] sm:$0xff]
    %v328 = vld [vmem:[#allocation2 + $0x48] sm:$0xff]
    %v329 = vld [vmem:[#allocation2 + $0x50] sm:$0xff]
    %v330 = vld [vmem:[#allocation2 + $0x58] sm:$0xff]
    %v331 = vld [vmem:[#allocation2 + $0x60] sm:$0xff]
    %v332 = vld [vmem:[#allocation2 + $0x68] sm:$0xff]
    %v333 = vld [vmem:[#allocation2 + $0x70] sm:$0xff]
    %v334 = vld [vmem:[#allocation2 + $0x78] sm:$0xff]
    %v335 = vld [vmem:[#allocation2 + $0x80] sm:$0xff]
    %v336 = vld [vmem:[#allocation2 + $0x88] sm:$0xff]
    %v337 = vld [vmem:[#allocation2 + $0x90] sm:$0xff]
    %v338 = vld [vmem:[#allocation2 + $0x98] sm:$0xff]
    %v339 = vld [vmem:[#allocation2 + $0xa0] sm:$0xff]
    %v340 = vld [vmem:[#allocation2 + $0xa8] sm:$0xff]
    %v341 = vld [vmem:[#allocation2 + $0xb0] sm:$0xff]
    %v342 = vld [vmem:[#allocation2 + $0xb8] sm:$0xff]
    %v343 = vld [vmem:[#allocation2 + $0xc0] sm:$0xff]
    %v344 = vld [vmem:[#allocation2 + $0xc8] sm:$0xff]
    %v345 = vld [vmem:[#allocation2 + $0xd0] sm:$0xff]
    %v346 = vld [vmem:[#allocation2 + $0xd8] sm:$0xff]
    %v347 = vld [vmem:[#allocation2 + $0xe0] sm:$0xff]
    %v348 = vld [vmem:[#allocation2 + $0xe8] sm:$0xff]
    %v349 = vld [vmem:[#allocation2 + $0xf0] sm:$0xff]
    %v350 = vld [vmem:[#allocation2 + $0xf8] sm:$0xff]
    %v351 = vld [vmem:[#allocation2 + $0x100] sm:$0xff]
    %v352 = vld [vmem:[#allocation2 + $0x108] sm:$0xff]
    %v353 = vld [vmem:[#allocation2 + $0x110] sm:$0xff]
    %v354 = vld [vmem:[#allocation2 + $0x118] sm:$0xff]
    %v355 = vld [vmem:[#allocation2 + $0x120] sm:$0xff]
    %v356 = vld [vmem:[#allocation2 + $0x128] sm:$0xff]
    %v357 = vld [vmem:[#allocation2 + $0x130] sm:$0xff]
    %v358 = vld [vmem:[#allocation2 + $0x138] sm:$0xff]
    %v359 = vld [vmem:[#allocation2 + $0x140] sm:$0xff]
    %v360 = vld [vmem:[#allocation2 + $0x148] sm:$0xff]
    %v361 = vld [vmem:[#allocation2 + $0x150] sm:$0xff]
    %v362 = vld [vmem:[#allocation2 + $0x158] sm:$0xff]
    %v363 = vld [vmem:[#allocation2 + $0x160] sm:$0xff]
    %v364 = vld [vmem:[#allocation2 + $0x168] sm:$0xff]
    %v365 = vld [vmem:[#allocation2 + $0x170] sm:$0xff]
    %v366 = vld [vmem:[#allocation2 + $0x178] sm:$0xff]
    %v367 = vld [vmem:[#allocation2 + $0x180] sm:$0xff]
    %v368 = vld [vmem:[#allocation2 + $0x188] sm:$0xff]
    %v369 = vld [vmem:[#allocation2 + $0x190] sm:$0xff]
    %v370 = vld [vmem:[#allocation2 + $0x198] sm:$0xff]
    %v371 = vld [vmem:[#allocation2 + $0x1a0] sm:$0xff]
    %v372 = vld [vmem:[#allocation2 + $0x1a8] sm:$0xff]
    %v373 = vld [vmem:[#allocation2 + $0x1b0] sm:$0xff]
    %v374 = vld [vmem:[#allocation2 + $0x1b8] sm:$0xff]
    %v375 = vld [vmem:[#allocation2 + $0x1c0] sm:$0xff]
    %v376 = vld [vmem:[#allocation2 + $0x1c8] sm:$0xff]
    %v377 = vld [vmem:[#allocation2 + $0x1d0] sm:$0xff]
    %v378 = vld [vmem:[#allocation2 + $0x1d8] sm:$0xff]
    %v379 = vld [vmem:[#allocation2 + $0x1e0] sm:$0xff]
    %v380 = vld [vmem:[#allocation2 + $0x1e8] sm:$0xff]
    %v381 = vld [vmem:[#allocation2 + $0x1f0] sm:$0xff]
    %v382 = vld [vmem:[#allocation2 + $0x1f8] sm:$0xff]
    %v383 = vld [vmem:[#allocation2 + $0x200] sm:$0xff]
    %v384 = vld [vmem:[#allocation2 + $0x208] sm:$0xff]
    %v385 = vld [vmem:[#allocation2 + $0x210] sm:$0xff]
    %v386 = vld [vmem:[#allocation2 + $0x218] sm:$0xff]
    %v387 = vld [vmem:[#allocation2 + $0x220] sm:$0xff]
    %v388 = vld [vmem:[#allocation2 + $0x228] sm:$0xff]
    %v389 = vld [vmem:[#allocation2 + $0x230] sm:$0xff]
    %v390 = vld [vmem:[#allocation2 + $0x238] sm:$0xff]
    %v391 = vld [vmem:[#allocation2 + $0x240] sm:$0xff]
    %v392 = vld [vmem:[#allocation2 + $0x248] sm:$0xff]
    %v393 = vld [vmem:[#allocation2 + $0x250] sm:$0xff]
    %v394 = vld [vmem:[#allocation2 + $0x258] sm:$0xff]
    %v395 = vld [vmem:[#allocation2 + $0x260] sm:$0xff]
    %v396 = vld [vmem:[#allocation2 + $0x268] sm:$0xff]
    %v397 = vld [vmem:[#allocation2 + $0x270] sm:$0xff]
    %v398 = vld [vmem:[#allocation2 + $0x278] sm:$0xff]
    %v399 = vld [vmem:[#allocation2 + $0x280] sm:$0xff]
    %v400 = vld [vmem:[#allocation2 + $0x288] sm:$0xff]
    %v401 = vld [vmem:[#allocation2 + $0x290] sm:$0xff]
    %v402 = vld [vmem:[#allocation2 + $0x298] sm:$0xff]
    %v403 = vld [vmem:[#allocation2 + $0x2a0] sm:$0xff]
    %v404 = vld [vmem:[#allocation2 + $0x2a8] sm:$0xff]
    %v405 = vld [vmem:[#allocation2 + $0x2b0] sm:$0xff]
    %v406 = vld [vmem:[#allocation2 + $0x2b8] sm:$0xff]
    %v407 = vld [vmem:[#allocation2 + $0x2c0] sm:$0xff]
    %v408 = vld [vmem:[#allocation2 + $0x2c8] sm:$0xff]
    %v409 = vld [vmem:[#allocation2 + $0x2d0] sm:$0xff]
    %v410 = vld [vmem:[#allocation2 + $0x2d8] sm:$0xff]
    %v411 = vld [vmem:[#allocation2 + $0x2e0] sm:$0xff]
    %v412 = vld [vmem:[#allocation2 + $0x2e8] sm:$0xff]
    %v413 = vld [vmem:[#allocation2 + $0x2f0] sm:$0xff]
    %v414 = vld [vmem:[#allocation2 + $0x2f8] sm:$0xff]
    %v415 = vld [vmem:[#allocation2 + $0x300] sm:$0xff]
    %v416 = vld [vmem:[#allocation2 + $0x308] sm:$0xff]
    %v417 = vld [vmem:[#allocation2 + $0x310] sm:$0xff]
    %v418 = vld [vmem:[#allocation2 + $0x318] sm:$0xff]
    %v419 = vld [vmem:[#allocation2 + $0x320] sm:$0xff]
    %v420 = vld [vmem:[#allocation2 + $0x328] sm:$0xff]
    %v421 = vld [vmem:[#allocation2 + $0x330] sm:$0xff]
    %v422 = vld [vmem:[#allocation2 + $0x338] sm:$0xff]
    %v423 = vld [vmem:[#allocation2 + $0x340] sm:$0xff]
    %v424 = vld [vmem:[#allocation2 + $0x348] sm:$0xff]
    %v425 = vld [vmem:[#allocation2 + $0x350] sm:$0xff]
    %v426 = vld [vmem:[#allocation2 + $0x358] sm:$0xff]
    %v427 = vld [vmem:[#allocation2 + $0x360] sm:$0xff]
    %v428 = vld [vmem:[#allocation2 + $0x368] sm:$0xff]
    %v429 = vld [vmem:[#allocation2 + $0x370] sm:$0xff]
    %v430 = vld [vmem:[#allocation2 + $0x378] sm:$0xff]
    %v431 = vld [vmem:[#allocation2 + $0x380] sm:$0xff]
    %v432 = vld [vmem:[#allocation2 + $0x388] sm:$0xff]
    %v433 = vld [vmem:[#allocation2 + $0x390] sm:$0xff]
    %v434 = vld [vmem:[#allocation2 + $0x398] sm:$0xff]
    %v435 = vld [vmem:[#allocation2 + $0x3a0] sm:$0xff]
    %v436 = vld [vmem:[#allocation2 + $0x3a8] sm:$0xff]
    %v437 = vld [vmem:[#allocation2 + $0x3b0] sm:$0xff]
    %v438 = vld [vmem:[#allocation2 + $0x3b8] sm:$0xff]
    %v439 = vld [vmem:[#allocation2 + $0x3c0] sm:$0xff]
    %v440 = vld [vmem:[#allocation2 + $0x3c8] sm:$0xff]
    %v441 = vld [vmem:[#allocation2 + $0x3d0] sm:$0xff]
    %v442 = vld [vmem:[#allocation2 + $0x3d8] sm:$0xff]
    %v443 = vld [vmem:[#allocation2 + $0x3e0] sm:$0xff]
    %v444 = vld [vmem:[#allocation2 + $0x3e8] sm:$0xff]
    %v445 = vld [vmem:[#allocation2 + $0x3f0] sm:$0xff]
    %v446 = vld [vmem:[#allocation2 + $0x3f8] sm:$0xff]
    %v447 = vld [vmem:[%s4] sm:$0xff]
    %v448 = vld [vmem:[%s4 + $0x8] sm:$0xff]
    %v451 = vunpack.c.l.b16 %v447
    %v452 = vunpack.c.h.b16 %v447
    %v453 = vunpack.c.l.b16 %v448
    %v454 = vunpack.c.h.b16 %v448
    %v455 = vpack.c.b16 %v451, %v451
    %v456 = vpack.c.b16 %v452, %v452
    %v457 = vpack.c.b16 %v453, %v453
    %v458 = vpack.c.b16 %v454, %v454
    %vm459 = vcmask 64512
    %v461 = vsel %vm459, %v44, 0
    %vm463 = vcmask 1043456
    %v465 = vsel %vm463, %v455, 0
    %v468 = vsel %vm463, %v456, 0
    %v471 = vsel %vm463, %v457, 0
    %v474 = vsel %vm463, %v458, 0
    %476 = vmatprep.subr.bf16.mxu0 %v468
    %477 = vmatpush1.bf16.msra.mxu0 %v465
    %478 = vmatprep.subr.bf16.mxu0 0
    %479 = vmatpush1.bf16.msra.mxu0 0
    %480 = vmatprep.subr.bf16.mxu0 0
    %481 = vmatpush1.bf16.msra.mxu0 0
    %482 = vmatprep.subr.bf16.mxu0 0
    %483 = vmatpush1.bf16.msra.mxu0 0
    %484 = vmatprep.subr.bf16.mxu0 0
    %485 = vmatpush1.bf16.msra.mxu0 0
    %486 = vmatprep.subr.bf16.mxu0 0
    %487 = vmatpush1.bf16.msra.mxu0 0
    %488 = vmatprep.subr.bf16.mxu0 0
    %489 = vmatpush1.bf16.msra.mxu0 0
    %490 = vmatprep.subr.bf16.mxu0 0
    %491 = vmatpush1.bf16.msra.mxu0 0
    %492 = vmatprep.subr.bf16.mxu0 0
    %493 = vmatpush1.bf16.msra.mxu0 0
    %494 = vmatprep.subr.bf16.mxu0 0
    %495 = vmatpush1.bf16.msra.mxu0 0
    %496 = vmatprep.subr.bf16.mxu0 0
    %497 = vmatpush1.bf16.msra.mxu0 0
    %498 = vmatprep.subr.bf16.mxu0 0
    %499 = vmatpush1.bf16.msra.mxu0 0
    %500 = vmatprep.subr.bf16.mxu0 0
    %501 = vmatpush1.bf16.msra.mxu0 0
    %502 = vmatprep.subr.bf16.mxu0 0
    %503 = vmatpush1.bf16.msra.mxu0 0
    %504 = vmatprep.subr.bf16.mxu0 0
    %505 = vmatpush1.bf16.msra.mxu0 0
    %506 = vmatprep.subr.bf16.mxu0 0
    %507 = vmatpush1.bf16.msra.mxu0 0
    %508 = vmatprep.mubr.bf16.mxu0 0
    %509 = vmatmul.mubr.bf16.gmra.mrb[0].mxu0 %v461
    %v510 = vpop.f32.mrb[0].mxu0
    %v511 = vadd.f32 0.0, %v510
    %v512 = vpop.f32.mrb[0].mxu0
    %v513 = vadd.f32 0.0, %v512
    %v514 = vpop.f32.mrb[0].mxu0
    %v515 = vpop.f32.mrb[0].mxu0
    %516 = vdwg.mxu0
    %517 = vmatprep.subr.bf16.mxu0 %v474
    %518 = vmatpush1.bf16.msra.mxu0 %v471
    %519 = vmatprep.subr.bf16.mxu0 0
    %520 = vmatpush1.bf16.msra.mxu0 0
    %521 = vmatprep.subr.bf16.mxu0 0
    %522 = vmatpush1.bf16.msra.mxu0 0
    %523 = vmatprep.subr.bf16.mxu0 0
    %524 = vmatpush1.bf16.msra.mxu0 0
    %525 = vmatprep.subr.bf16.mxu0 0
    %526 = vmatpush1.bf16.msra.mxu0 0
    %527 = vmatprep.subr.bf16.mxu0 0
    %528 = vmatpush1.bf16.msra.mxu0 0
    %529 = vmatprep.subr.bf16.mxu0 0
    %530 = vmatpush1.bf16.msra.mxu0 0
    %531 = vmatprep.subr.bf16.mxu0 0
    %532 = vmatpush1.bf16.msra.mxu0 0
    %533 = vmatprep.subr.bf16.mxu0 0
    %534 = vmatpush1.bf16.msra.mxu0 0
    %535 = vmatprep.subr.bf16.mxu0 0
    %536 = vmatpush1.bf16.msra.mxu0 0
    %537 = vmatprep.subr.bf16.mxu0 0
    %538 = vmatpush1.bf16.msra.mxu0 0
    %539 = vmatprep.subr.bf16.mxu0 0
    %540 = vmatpush1.bf16.msra.mxu0 0
    %541 = vmatprep.subr.bf16.mxu0 0
    %542 = vmatpush1.bf16.msra.mxu0 0
    %543 = vmatprep.subr.bf16.mxu0 0
    %544 = vmatpush1.bf16.msra.mxu0 0
    %545 = vmatprep.subr.bf16.mxu0 0
    %546 = vmatpush1.bf16.msra.mxu0 0
    %547 = vmatprep.subr.bf16.mxu0 0
    %548 = vmatpush1.bf16.msra.mxu0 0
    %549 = vmatprep.mubr.bf16.mxu0 0
    %550 = vmatmul.mubr.bf16.gmra.mrb[0].mxu0 %v461
    %v551 = vpop.f32.mrb[0].mxu0
    %v552 = vadd.f32 0.0, %v551
    %v553 = vpop.f32.mrb[0].mxu0
    %v554 = vadd.f32 0.0, %v553
    %v555 = vpop.f32.mrb[0].mxu0
    %v556 = vpop.f32.mrb[0].mxu0
    %557 = vdwg.mxu0
    %v686 = vunpack.c.l.b16 %v319
    %v687 = vunpack.c.h.b16 %v319
    %v688 = vunpack.c.l.b16 %v320
    %v689 = vunpack.c.h.b16 %v320
    %v690 = vunpack.c.l.b16 %v321
    %v691 = vunpack.c.h.b16 %v321
    %v692 = vunpack.c.l.b16 %v322
    %v693 = vunpack.c.h.b16 %v322
    %v694 = vunpack.c.l.b16 %v323
    %v695 = vunpack.c.h.b16 %v323
    %v696 = vunpack.c.l.b16 %v324
    %v697 = vunpack.c.h.b16 %v324
    %v698 = vunpack.c.l.b16 %v325
    %v699 = vunpack.c.h.b16 %v325
    %v700 = vunpack.c.l.b16 %v326
    %v701 = vunpack.c.h.b16 %v326
    %v702 = vunpack.c.l.b16 %v327
    %v703 = vunpack.c.h.b16 %v327
    %v704 = vunpack.c.l.b16 %v328
    %v705 = vunpack.c.h.b16 %v328
    %v706 = vunpack.c.l.b16 %v329
    %v707 = vunpack.c.h.b16 %v329
    %v708 = vunpack.c.l.b16 %v330
    %v709 = vunpack.c.h.b16 %v330
    %v710 = vunpack.c.l.b16 %v331
    %v711 = vunpack.c.h.b16 %v331
    %v712 = vunpack.c.l.b16 %v332
    %v713 = vunpack.c.h.b16 %v332
    %v714 = vunpack.c.l.b16 %v333
    %v715 = vunpack.c.h.b16 %v333
    %v716 = vunpack.c.l.b16 %v334
    %v717 = vunpack.c.h.b16 %v334
    %v718 = vunpack.c.l.b16 %v335
    %v719 = vunpack.c.h.b16 %v335
    %v720 = vunpack.c.l.b16 %v336
    %v721 = vunpack.c.h.b16 %v336
    %v722 = vunpack.c.l.b16 %v337
    %v723 = vunpack.c.h.b16 %v337
    %v724 = vunpack.c.l.b16 %v338
    %v725 = vunpack.c.h.b16 %v338
    %v726 = vunpack.c.l.b16 %v339
    %v727 = vunpack.c.h.b16 %v339
    %v728 = vunpack.c.l.b16 %v340
    %v729 = vunpack.c.h.b16 %v340
    %v730 = vunpack.c.l.b16 %v341
    %v731 = vunpack.c.h.b16 %v341
    %v732 = vunpack.c.l.b16 %v342
    %v733 = vunpack.c.h.b16 %v342
    %v734 = vunpack.c.l.b16 %v343
    %v735 = vunpack.c.h.b16 %v343
    %v736 = vunpack.c.l.b16 %v344
    %v737 = vunpack.c.h.b16 %v344
    %v738 = vunpack.c.l.b16 %v345
    %v739 = vunpack.c.h.b16 %v345
    %v740 = vunpack.c.l.b16 %v346
    %v741 = vunpack.c.h.b16 %v346
    %v742 = vunpack.c.l.b16 %v347
    %v743 = vunpack.c.h.b16 %v347
    %v744 = vunpack.c.l.b16 %v348
    %v745 = vunpack.c.h.b16 %v348
    %v746 = vunpack.c.l.b16 %v349
    %v747 = vunpack.c.h.b16 %v349
    %v748 = vunpack.c.l.b16 %v350
    %v749 = vunpack.c.h.b16 %v350
    %v750 = vunpack.c.l.b16 %v351
    %v751 = vunpack.c.h.b16 %v351
    %v752 = vunpack.c.l.b16 %v352
    %v753 = vunpack.c.h.b16 %v352
    %v754 = vunpack.c.l.b16 %v353
    %v755 = vunpack.c.h.b16 %v353
    %v756 = vunpack.c.l.b16 %v354
    %v757 = vunpack.c.h.b16 %v354
    %v758 = vunpack.c.l.b16 %v355
    %v759 = vunpack.c.h.b16 %v355
    %v760 = vunpack.c.l.b16 %v356
    %v761 = vunpack.c.h.b16 %v356
    %v762 = vunpack.c.l.b16 %v357
    %v763 = vunpack.c.h.b16 %v357
    %v764 = vunpack.c.l.b16 %v358
    %v765 = vunpack.c.h.b16 %v358
    %v766 = vunpack.c.l.b16 %v359
    %v767 = vunpack.c.h.b16 %v359
    %v768 = vunpack.c.l.b16 %v360
    %v769 = vunpack.c.h.b16 %v360
    %v770 = vunpack.c.l.b16 %v361
    %v771 = vunpack.c.h.b16 %v361
    %v772 = vunpack.c.l.b16 %v362
    %v773 = vunpack.c.h.b16 %v362
    %v774 = vunpack.c.l.b16 %v363
    %v775 = vunpack.c.h.b16 %v363
    %v776 = vunpack.c.l.b16 %v364
    %v777 = vunpack.c.h.b16 %v364
    %v778 = vunpack.c.l.b16 %v365
    %v779 = vunpack.c.h.b16 %v365
    %v780 = vunpack.c.l.b16 %v366
    %v781 = vunpack.c.h.b16 %v366
    %v782 = vunpack.c.l.b16 %v367
    %v783 = vunpack.c.h.b16 %v367
    %v784 = vunpack.c.l.b16 %v368
    %v785 = vunpack.c.h.b16 %v368
    %v786 = vunpack.c.l.b16 %v369
    %v787 = vunpack.c.h.b16 %v369
    %v788 = vunpack.c.l.b16 %v370
    %v789 = vunpack.c.h.b16 %v370
    %v790 = vunpack.c.l.b16 %v371
    %v791 = vunpack.c.h.b16 %v371
    %v792 = vunpack.c.l.b16 %v372
    %v793 = vunpack.c.h.b16 %v372
    %v794 = vunpack.c.l.b16 %v373
    %v795 = vunpack.c.h.b16 %v373
    %v796 = vunpack.c.l.b16 %v374
    %v797 = vunpack.c.h.b16 %v374
    %v798 = vunpack.c.l.b16 %v375
    %v799 = vunpack.c.h.b16 %v375
    %v800 = vunpack.c.l.b16 %v376
    %v801 = vunpack.c.h.b16 %v376
    %v802 = vunpack.c.l.b16 %v377
    %v803 = vunpack.c.h.b16 %v377
    %v804 = vunpack.c.l.b16 %v378
    %v805 = vunpack.c.h.b16 %v378
    %v806 = vunpack.c.l.b16 %v379
    %v807 = vunpack.c.h.b16 %v379
    %v808 = vunpack.c.l.b16 %v380
    %v809 = vunpack.c.h.b16 %v380
    %v810 = vunpack.c.l.b16 %v381
    %v811 = vunpack.c.h.b16 %v381
    %v812 = vunpack.c.l.b16 %v382
    %v813 = vunpack.c.h.b16 %v382
    %v814 = vunpack.c.l.b16 %v383
    %v815 = vunpack.c.h.b16 %v383
    %v816 = vunpack.c.l.b16 %v384
    %v817 = vunpack.c.h.b16 %v384
    %v818 = vunpack.c.l.b16 %v385
    %v819 = vunpack.c.h.b16 %v385
    %v820 = vunpack.c.l.b16 %v386
    %v821 = vunpack.c.h.b16 %v386
    %v822 = vunpack.c.l.b16 %v387
    %v823 = vunpack.c.h.b16 %v387
    %v824 = vunpack.c.l.b16 %v388
    %v825 = vunpack.c.h.b16 %v388
    %v826 = vunpack.c.l.b16 %v389
    %v827 = vunpack.c.h.b16 %v389
    %v828 = vunpack.c.l.b16 %v390
    %v829 = vunpack.c.h.b16 %v390
    %v830 = vunpack.c.l.b16 %v391
    %v831 = vunpack.c.h.b16 %v391
    %v832 = vunpack.c.l.b16 %v392
    %v833 = vunpack.c.h.b16 %v392
    %v834 = vunpack.c.l.b16 %v393
    %v835 = vunpack.c.h.b16 %v393
    %v836 = vunpack.c.l.b16 %v394
    %v837 = vunpack.c.h.b16 %v394
    %v838 = vunpack.c.l.b16 %v395
    %v839 = vunpack.c.h.b16 %v395
    %v840 = vunpack.c.l.b16 %v396
    %v841 = vunpack.c.h.b16 %v396
    %v842 = vunpack.c.l.b16 %v397
    %v843 = vunpack.c.h.b16 %v397
    %v844 = vunpack.c.l.b16 %v398
    %v845 = vunpack.c.h.b16 %v398
    %v846 = vunpack.c.l.b16 %v399
    %v847 = vunpack.c.h.b16 %v399
    %v848 = vunpack.c.l.b16 %v400
    %v849 = vunpack.c.h.b16 %v400
    %v850 = vunpack.c.l.b16 %v401
    %v851 = vunpack.c.h.b16 %v401
    %v852 = vunpack.c.l.b16 %v402
    %v853 = vunpack.c.h.b16 %v402
    %v854 = vunpack.c.l.b16 %v403
    %v855 = vunpack.c.h.b16 %v403
    %v856 = vunpack.c.l.b16 %v404
    %v857 = vunpack.c.h.b16 %v404
    %v858 = vunpack.c.l.b16 %v405
    %v859 = vunpack.c.h.b16 %v405
    %v860 = vunpack.c.l.b16 %v406
    %v861 = vunpack.c.h.b16 %v406
    %v862 = vunpack.c.l.b16 %v407
    %v863 = vunpack.c.h.b16 %v407
    %v864 = vunpack.c.l.b16 %v408
    %v865 = vunpack.c.h.b16 %v408
    %v866 = vunpack.c.l.b16 %v409
    %v867 = vunpack.c.h.b16 %v409
    %v868 = vunpack.c.l.b16 %v410
    %v869 = vunpack.c.h.b16 %v410
    %v870 = vunpack.c.l.b16 %v411
    %v871 = vunpack.c.h.b16 %v411
    %v872 = vunpack.c.l.b16 %v412
    %v873 = vunpack.c.h.b16 %v412
    %v874 = vunpack.c.l.b16 %v413
    %v875 = vunpack.c.h.b16 %v413
    %v876 = vunpack.c.l.b16 %v414
    %v877 = vunpack.c.h.b16 %v414
    %v878 = vunpack.c.l.b16 %v415
    %v879 = vunpack.c.h.b16 %v415
    %v880 = vunpack.c.l.b16 %v416
    %v881 = vunpack.c.h.b16 %v416
    %v882 = vunpack.c.l.b16 %v417
    %v883 = vunpack.c.h.b16 %v417
    %v884 = vunpack.c.l.b16 %v418
    %v885 = vunpack.c.h.b16 %v418
    %v886 = vunpack.c.l.b16 %v419
    %v887 = vunpack.c.h.b16 %v419
    %v888 = vunpack.c.l.b16 %v420
    %v889 = vunpack.c.h.b16 %v420
    %v890 = vunpack.c.l.b16 %v421
    %v891 = vunpack.c.h.b16 %v421
    %v892 = vunpack.c.l.b16 %v422
    %v893 = vunpack.c.h.b16 %v422
    %v894 = vunpack.c.l.b16 %v423
    %v895 = vunpack.c.h.b16 %v423
    %v896 = vunpack.c.l.b16 %v424
    %v897 = vunpack.c.h.b16 %v424
    %v898 = vunpack.c.l.b16 %v425
    %v899 = vunpack.c.h.b16 %v425
    %v900 = vunpack.c.l.b16 %v426
    %v901 = vunpack.c.h.b16 %v426
    %v902 = vunpack.c.l.b16 %v427
    %v903 = vunpack.c.h.b16 %v427
    %v904 = vunpack.c.l.b16 %v428
    %v905 = vunpack.c.h.b16 %v428
    %v906 = vunpack.c.l.b16 %v429
    %v907 = vunpack.c.h.b16 %v429
    %v908 = vunpack.c.l.b16 %v430
    %v909 = vunpack.c.h.b16 %v430
    %v910 = vunpack.c.l.b16 %v431
    %v911 = vunpack.c.h.b16 %v431
    %v912 = vunpack.c.l.b16 %v432
    %v913 = vunpack.c.h.b16 %v432
    %v914 = vunpack.c.l.b16 %v433
    %v915 = vunpack.c.h.b16 %v433
    %v916 = vunpack.c.l.b16 %v434
    %v917 = vunpack.c.h.b16 %v434
    %v918 = vunpack.c.l.b16 %v435
    %v919 = vunpack.c.h.b16 %v435
    %v920 = vunpack.c.l.b16 %v436
    %v921 = vunpack.c.h.b16 %v436
    %v922 = vunpack.c.l.b16 %v437
    %v923 = vunpack.c.h.b16 %v437
    %v924 = vunpack.c.l.b16 %v438
    %v925 = vunpack.c.h.b16 %v438
    %v926 = vunpack.c.l.b16 %v439
    %v927 = vunpack.c.h.b16 %v439
    %v928 = vunpack.c.l.b16 %v440
    %v929 = vunpack.c.h.b16 %v440
    %v930 = vunpack.c.l.b16 %v441
    %v931 = vunpack.c.h.b16 %v441
    %v932 = vunpack.c.l.b16 %v442
    %v933 = vunpack.c.h.b16 %v442
    %v934 = vunpack.c.l.b16 %v443
    %v935 = vunpack.c.h.b16 %v443
    %v936 = vunpack.c.l.b16 %v444
    %v937 = vunpack.c.h.b16 %v444
    %v938 = vunpack.c.l.b16 %v445
    %v939 = vunpack.c.h.b16 %v445
    %v940 = vunpack.c.l.b16 %v446
    %v941 = vunpack.c.h.b16 %v446
    %v942 = vpack.c.b16 %v690, %v686
    %v943 = vpack.c.b16 %v691, %v687
    %v944 = vpack.c.b16 %v692, %v688
    %v945 = vpack.c.b16 %v693, %v689
    %v946 = vpack.c.b16 %v698, %v694
    %v947 = vpack.c.b16 %v699, %v695
    %v948 = vpack.c.b16 %v700, %v696
    %v949 = vpack.c.b16 %v701, %v697
    %v950 = vpack.c.b16 %v706, %v702
    %v951 = vpack.c.b16 %v707, %v703
    %v952 = vpack.c.b16 %v708, %v704
    %v953 = vpack.c.b16 %v709, %v705
    %v954 = vpack.c.b16 %v714, %v710
    %v955 = vpack.c.b16 %v715, %v711
    %v956 = vpack.c.b16 %v716, %v712
    %v957 = vpack.c.b16 %v717, %v713
    %v958 = vpack.c.b16 %v722, %v718
    %v959 = vpack.c.b16 %v723, %v719
    %v960 = vpack.c.b16 %v724, %v720
    %v961 = vpack.c.b16 %v725, %v721
    %v962 = vpack.c.b16 %v730, %v726
    %v963 = vpack.c.b16 %v731, %v727
    %v964 = vpack.c.b16 %v732, %v728
    %v965 = vpack.c.b16 %v733, %v729
    %v966 = vpack.c.b16 %v738, %v734
    %v967 = vpack.c.b16 %v739, %v735
    %v968 = vpack.c.b16 %v740, %v736
    %v969 = vpack.c.b16 %v741, %v737
    %v970 = vpack.c.b16 %v746, %v742
    %v971 = vpack.c.b16 %v747, %v743
    %v972 = vpack.c.b16 %v748, %v744
    %v973 = vpack.c.b16 %v749, %v745
    %v974 = vpack.c.b16 %v754, %v750
    %v975 = vpack.c.b16 %v755, %v751
    %v976 = vpack.c.b16 %v756, %v752
    %v977 = vpack.c.b16 %v757, %v753
    %v978 = vpack.c.b16 %v762, %v758
    %v979 = vpack.c.b16 %v763, %v759
    %v980 = vpack.c.b16 %v764, %v760
    %v981 = vpack.c.b16 %v765, %v761
    %v982 = vpack.c.b16 %v770, %v766
    %v983 = vpack.c.b16 %v771, %v767
    %v984 = vpack.c.b16 %v772, %v768
    %v985 = vpack.c.b16 %v773, %v769
    %v986 = vpack.c.b16 %v778, %v774
    %v987 = vpack.c.b16 %v779, %v775
    %v988 = vpack.c.b16 %v780, %v776
    %v989 = vpack.c.b16 %v781, %v777
    %v990 = vpack.c.b16 %v786, %v782
    %v991 = vpack.c.b16 %v787, %v783
    %v992 = vpack.c.b16 %v788, %v784
    %v993 = vpack.c.b16 %v789, %v785
    %v994 = vpack.c.b16 %v794, %v790
    %v995 = vpack.c.b16 %v795, %v791
    %v996 = vpack.c.b16 %v796, %v792
    %v997 = vpack.c.b16 %v797, %v793
    %v998 = vpack.c.b16 %v802, %v798
    %v999 = vpack.c.b16 %v803, %v799
    %v1000 = vpack.c.b16 %v804, %v800
    %v1001 = vpack.c.b16 %v805, %v801
    %v1002 = vpack.c.b16 %v810, %v806
    %v1003 = vpack.c.b16 %v811, %v807
    %v1004 = vpack.c.b16 %v812, %v808
    %v1005 = vpack.c.b16 %v813, %v809
    %v1006 = vpack.c.b16 %v818, %v814
    %v1007 = vpack.c.b16 %v819, %v815
    %v1008 = vpack.c.b16 %v820, %v816
    %v1009 = vpack.c.b16 %v821, %v817
    %v1010 = vpack.c.b16 %v826, %v822
    %v1011 = vpack.c.b16 %v827, %v823
    %v1012 = vpack.c.b16 %v828, %v824
    %v1013 = vpack.c.b16 %v829, %v825
    %v1014 = vpack.c.b16 %v834, %v830
    %v1015 = vpack.c.b16 %v835, %v831
    %v1016 = vpack.c.b16 %v836, %v832
    %v1017 = vpack.c.b16 %v837, %v833
    %v1018 = vpack.c.b16 %v842, %v838
    %v1019 = vpack.c.b16 %v843, %v839
    %v1020 = vpack.c.b16 %v844, %v840
    %v1021 = vpack.c.b16 %v845, %v841
    %v1022 = vpack.c.b16 %v850, %v846
    %v1023 = vpack.c.b16 %v851, %v847
    %v1024 = vpack.c.b16 %v852, %v848
    %v1025 = vpack.c.b16 %v853, %v849
    %v1026 = vpack.c.b16 %v858, %v854
    %v1027 = vpack.c.b16 %v859, %v855
    %v1028 = vpack.c.b16 %v860, %v856
    %v1029 = vpack.c.b16 %v861, %v857
    %v1030 = vpack.c.b16 %v866, %v862
    %v1031 = vpack.c.b16 %v867, %v863
    %v1032 = vpack.c.b16 %v868, %v864
    %v1033 = vpack.c.b16 %v869, %v865
    %v1034 = vpack.c.b16 %v874, %v870
    %v1035 = vpack.c.b16 %v875, %v871
    %v1036 = vpack.c.b16 %v876, %v872
    %v1037 = vpack.c.b16 %v877, %v873
    %v1038 = vpack.c.b16 %v882, %v878
    %v1039 = vpack.c.b16 %v883, %v879
    %v1040 = vpack.c.b16 %v884, %v880
    %v1041 = vpack.c.b16 %v885, %v881
    %v1042 = vpack.c.b16 %v890, %v886
    %v1043 = vpack.c.b16 %v891, %v887
    %v1044 = vpack.c.b16 %v892, %v888
    %v1045 = vpack.c.b16 %v893, %v889
    %v1046 = vpack.c.b16 %v898, %v894
    %v1047 = vpack.c.b16 %v899, %v895
    %v1048 = vpack.c.b16 %v900, %v896
    %v1049 = vpack.c.b16 %v901, %v897
    %v1050 = vpack.c.b16 %v906, %v902
    %v1051 = vpack.c.b16 %v907, %v903
    %v1052 = vpack.c.b16 %v908, %v904
    %v1053 = vpack.c.b16 %v909, %v905
    %v1054 = vpack.c.b16 %v914, %v910
    %v1055 = vpack.c.b16 %v915, %v911
    %v1056 = vpack.c.b16 %v916, %v912
    %v1057 = vpack.c.b16 %v917, %v913
    %v1058 = vpack.c.b16 %v922, %v918
    %v1059 = vpack.c.b16 %v923, %v919
    %v1060 = vpack.c.b16 %v924, %v920
    %v1061 = vpack.c.b16 %v925, %v921
    %v1062 = vpack.c.b16 %v930, %v926
    %v1063 = vpack.c.b16 %v931, %v927
    %v1064 = vpack.c.b16 %v932, %v928
    %v1065 = vpack.c.b16 %v933, %v929
    %v1066 = vpack.c.b16 %v938, %v934
    %v1067 = vpack.c.b16 %v939, %v935
    %v1068 = vpack.c.b16 %v940, %v936
    %v1069 = vpack.c.b16 %v941, %v937
    %1198 = vmatprep.subr.bf16.mxu0 %v943
    %1199 = vmatpush1.bf16.msra.mxu0 %v942
    %1200 = vmatprep.subr.bf16.mxu0 %v947
    %1201 = vmatpush1.bf16.msra.mxu0 %v946
    %1202 = vmatprep.subr.bf16.mxu0 %v951
    %1203 = vmatpush1.bf16.msra.mxu0 %v950
    %1204 = vmatprep.subr.bf16.mxu0 %v955
    %1205 = vmatpush1.bf16.msra.mxu0 %v954
    %1206 = vmatprep.subr.bf16.mxu0 %v959
    %1207 = vmatpush1.bf16.msra.mxu0 %v958
    %1208 = vmatprep.subr.bf16.mxu0 %v963
    %1209 = vmatpush1.bf16.msra.mxu0 %v962
    %1210 = vmatprep.subr.bf16.mxu0 %v967
    %1211 = vmatpush1.bf16.msra.mxu0 %v966
    %1212 = vmatprep.subr.bf16.mxu0 %v971
    %1213 = vmatpush1.bf16.msra.mxu0 %v970
    %1214 = vmatprep.subr.bf16.mxu0 %v975
    %1215 = vmatpush1.bf16.msra.mxu0 %v974
    %1216 = vmatprep.subr.bf16.mxu0 %v979
    %1217 = vmatpush1.bf16.msra.mxu0 %v978
    %1218 = vmatprep.subr.bf16.mxu0 %v983
    %1219 = vmatpush1.bf16.msra.mxu0 %v982
    %1220 = vmatprep.subr.bf16.mxu0 %v987
    %1221 = vmatpush1.bf16.msra.mxu0 %v986
    %1222 = vmatprep.subr.bf16.mxu0 %v991
    %1223 = vmatpush1.bf16.msra.mxu0 %v990
    %1224 = vmatprep.subr.bf16.mxu0 %v995
    %1225 = vmatpush1.bf16.msra.mxu0 %v994
    %1226 = vmatprep.subr.bf16.mxu0 %v999
    %1227 = vmatpush1.bf16.msra.mxu0 %v998
    %1228 = vmatprep.subr.bf16.mxu0 %v1003
    %1229 = vmatpush1.bf16.msra.mxu0 %v1002
    %1230 = vmatprep.mubr.bf16.mxu0 %v316
    %1231 = vmatmul.mubr.bf16.gmra.mrb[0].mxu0 %v315
    %v1232 = vpop.f32.mrb[0].mxu0
    %v1233 = vadd.f32 %v511, %v1232
    %v1234 = vpop.f32.mrb[0].mxu0
    %v1235 = vadd.f32 %v513, %v1234
    %v1236 = vpop.f32.mrb[0].mxu0
    %v1237 = vpop.f32.mrb[0].mxu0
    %1238 = vdwg.mxu0
    %1239 = vmatprep.subr.bf16.mxu0 %v1007
    %1240 = vmatpush1.bf16.msra.mxu0 %v1006
    %1241 = vmatprep.subr.bf16.mxu0 %v1011
    %1242 = vmatpush1.bf16.msra.mxu0 %v1010
    %1243 = vmatprep.subr.bf16.mxu0 %v1015
    %1244 = vmatpush1.bf16.msra.mxu0 %v1014
    %1245 = vmatprep.subr.bf16.mxu0 %v1019
    %1246 = vmatpush1.bf16.msra.mxu0 %v1018
    %1247 = vmatprep.subr.bf16.mxu0 %v1023
    %1248 = vmatpush1.bf16.msra.mxu0 %v1022
    %1249 = vmatprep.subr.bf16.mxu0 %v1027
    %1250 = vmatpush1.bf16.msra.mxu0 %v1026
    %1251 = vmatprep.subr.bf16.mxu0 %v1031
    %1252 = vmatpush1.bf16.msra.mxu0 %v1030
    %1253 = vmatprep.subr.bf16.mxu0 %v1035
    %1254 = vmatpush1.bf16.msra.mxu0 %v1034
    %1255 = vmatprep.subr.bf16.mxu0 %v1039
    %1256 = vmatpush1.bf16.msra.mxu0 %v1038
    %1257 = vmatprep.subr.bf16.mxu0 %v1043
    %1258 = vmatpush1.bf16.msra.mxu0 %v1042
    %1259 = vmatprep.subr.bf16.mxu0 %v1047
    %1260 = vmatpush1.bf16.msra.mxu0 %v1046
    %1261 = vmatprep.subr.bf16.mxu0 %v1051
    %1262 = vmatpush1.bf16.msra.mxu0 %v1050
    %1263 = vmatprep.subr.bf16.mxu0 %v1055
    %1264 = vmatpush1.bf16.msra.mxu0 %v1054
    %1265 = vmatprep.subr.bf16.mxu0 %v1059
    %1266 = vmatpush1.bf16.msra.mxu0 %v1058
    %1267 = vmatprep.subr.bf16.mxu0 %v1063
    %1268 = vmatpush1.bf16.msra.mxu0 %v1062
    %1269 = vmatprep.subr.bf16.mxu0 %v1067
    %1270 = vmatpush1.bf16.msra.mxu0 %v1066
    %1271 = vmatprep.mubr.bf16.mxu0 %v318
    %1272 = vmatmul.mubr.bf16.gmra.mrb[0].mxu0 %v317
    %v1273 = vpop.f32.mrb[0].mxu0
    %v1274 = vadd.f32 %v1233, %v1273
    %v1275 = vpop.f32.mrb[0].mxu0
    %v1276 = vadd.f32 %v1235, %v1275
    %v1277 = vpop.f32.mrb[0].mxu0
    %v1278 = vpop.f32.mrb[0].mxu0
    %1279 = vdwg.mxu0
    %1280 = vmatprep.subr.bf16.mxu0 %v945
    %1281 = vmatpush1.bf16.msra.mxu0 %v944
    %1282 = vmatprep.subr.bf16.mxu0 %v949
    %1283 = vmatpush1.bf16.msra.mxu0 %v948
    %1284 = vmatprep.subr.bf16.mxu0 %v953
    %1285 = vmatpush1.bf16.msra.mxu0 %v952
    %1286 = vmatprep.subr.bf16.mxu0 %v957
    %1287 = vmatpush1.bf16.msra.mxu0 %v956
    %1288 = vmatprep.subr.bf16.mxu0 %v961
    %1289 = vmatpush1.bf16.msra.mxu0 %v960
    %1290 = vmatprep.subr.bf16.mxu0 %v965
    %1291 = vmatpush1.bf16.msra.mxu0 %v964
    %1292 = vmatprep.subr.bf16.mxu0 %v969
    %1293 = vmatpush1.bf16.msra.mxu0 %v968
    %1294 = vmatprep.subr.bf16.mxu0 %v973
    %1295 = vmatpush1.bf16.msra.mxu0 %v972
    %1296 = vmatprep.subr.bf16.mxu0 %v977
    %1297 = vmatpush1.bf16.msra.mxu0 %v976
    %1298 = vmatprep.subr.bf16.mxu0 %v981
    %1299 = vmatpush1.bf16.msra.mxu0 %v980
    %1300 = vmatprep.subr.bf16.mxu0 %v985
    %1301 = vmatpush1.bf16.msra.mxu0 %v984
    %1302 = vmatprep.subr.bf16.mxu0 %v989
    %1303 = vmatpush1.bf16.msra.mxu0 %v988
    %1304 = vmatprep.subr.bf16.mxu0 %v993
    %1305 = vmatpush1.bf16.msra.mxu0 %v992
    %1306 = vmatprep.subr.bf16.mxu0 %v997
    %1307 = vmatpush1.bf16.msra.mxu0 %v996
    %1308 = vmatprep.subr.bf16.mxu0 %v1001
    %1309 = vmatpush1.bf16.msra.mxu0 %v1000
    %1310 = vmatprep.subr.bf16.mxu0 %v1005
    %1311 = vmatpush1.bf16.msra.mxu0 %v1004
    %1312 = vmatprep.mubr.bf16.mxu0 %v316
    %1313 = vmatmul.mubr.bf16.gmra.mrb[0].mxu0 %v315
    %v1314 = vpop.f32.mrb[0].mxu0
    %v1315 = vadd.f32 %v552, %v1314
    %v1316 = vpop.f32.mrb[0].mxu0
    %v1317 = vadd.f32 %v554, %v1316
    %v1318 = vpop.f32.mrb[0].mxu0
    %v1319 = vpop.f32.mrb[0].mxu0
    %1320 = vdwg.mxu0
    %1321 = vmatprep.subr.bf16.mxu0 %v1009
    %1322 = vmatpush1.bf16.msra.mxu0 %v1008
    %1323 = vmatprep.subr.bf16.mxu0 %v1013
    %1324 = vmatpush1.bf16.msra.mxu0 %v1012
    %1325 = vmatprep.subr.bf16.mxu0 %v1017
    %1326 = vmatpush1.bf16.msra.mxu0 %v1016
    %1327 = vmatprep.subr.bf16.mxu0 %v1021
    %1328 = vmatpush1.bf16.msra.mxu0 %v1020
    %1329 = vmatprep.subr.bf16.mxu0 %v1025
    %1330 = vmatpush1.bf16.msra.mxu0 %v1024
    %1331 = vmatprep.subr.bf16.mxu0 %v1029
    %1332 = vmatpush1.bf16.msra.mxu0 %v1028
    %1333 = vmatprep.subr.bf16.mxu0 %v1033
    %1334 = vmatpush1.bf16.msra.mxu0 %v1032
    %1335 = vmatprep.subr.bf16.mxu0 %v1037
    %1336 = vmatpush1.bf16.msra.mxu0 %v1036
    %1337 = vmatprep.subr.bf16.mxu0 %v1041
    %1338 = vmatpush1.bf16.msra.mxu0 %v1040
    %1339 = vmatprep.subr.bf16.mxu0 %v1045
    %1340 = vmatpush1.bf16.msra.mxu0 %v1044
    %1341 = vmatprep.subr.bf16.mxu0 %v1049
    %1342 = vmatpush1.bf16.msra.mxu0 %v1048
    %1343 = vmatprep.subr.bf16.mxu0 %v1053
    %1344 = vmatpush1.bf16.msra.mxu0 %v1052
    %1345 = vmatprep.subr.bf16.mxu0 %v1057
    %1346 = vmatpush1.bf16.msra.mxu0 %v1056
    %1347 = vmatprep.subr.bf16.mxu0 %v1061
    %1348 = vmatpush1.bf16.msra.mxu0 %v1060
    %1349 = vmatprep.subr.bf16.mxu0 %v1065
    %1350 = vmatpush1.bf16.msra.mxu0 %v1064
    %1351 = vmatprep.subr.bf16.mxu0 %v1069
    %1352 = vmatpush1.bf16.msra.mxu0 %v1068
    %1353 = vmatprep.mubr.bf16.mxu0 %v318
    %1354 = vmatmul.mubr.bf16.gmra.mrb[0].mxu0 %v317
    %v1355 = vpop.f32.mrb[0].mxu0
    %v1356 = vadd.f32 %v1315, %v1355
    %v1357 = vpop.f32.mrb[0].mxu0
    %v1358 = vadd.f32 %v1317, %v1357
    %v1359 = vpop.f32.mrb[0].mxu0
    %v1360 = vpop.f32.mrb[0].mxu0
    %1361 = vdwg.mxu0
    %v1363 = vlaneseq
    %v1364 = vshrl.u32 %v1363, 7
    %v1365 = vsub.s32 0, %v1364
    %v1366 = vrot.slane %v51, %v1365
    %v1367 = vlaneseq
    %v1368 = vshrl.u32 %v1367, 7
    %v1369 = vsub.s32 1, %v1368
    %v1370 = vrot.slane %v51, %v1369
    %v1371 = vlaneseq
    %v1372 = vshrl.u32 %v1371, 7
    %v1373 = vsub.s32 2, %v1372
    %v1374 = vrot.slane %v51, %v1373
    %v1375 = vlaneseq
    %v1376 = vshrl.u32 %v1375, 7
    %v1377 = vsub.s32 3, %v1376
    %v1378 = vrot.slane %v51, %v1377
    %v1383 = vadd.f32 %v1274, %v1366
    %v1384 = vadd.f32 %v1276, %v1370
    %v1385 = vadd.f32 %v1356, %v1374
    %v1386 = vadd.f32 %v1358, %v1378
    %v1387 = vmax.f32 %v1383, 0.0
    %v1388 = vmax.f32 %v1384, 0.0
    %v1389 = vmax.f32 %v1385, 0.0
    %v1390 = vmax.f32 %v1386, 0.0
    %v1391 = vpack.c.bf16 %v1387, %v1387
    %v1392 = vpack.c.bf16 %v1388, %v1388
    %v1393 = vpack.c.bf16 %v1389, %v1389
    %v1394 = vpack.c.bf16 %v1390, %v1390
    %v1395 = vld [vmem:[%s5] sm:$0xf]
    %v1396 = vld [vmem:[%s5 + $0x4] sm:$0xf]
    %v1397 = vld [vmem:[%s5 + $0x8] sm:$0xf]
    %v1398 = vld [vmem:[%s5 + $0xc] sm:$0xf]
    %v1399 = vld [vmem:[%s5 + $0x10] sm:$0xf]
    %v1400 = vld [vmem:[%s5 + $0x14] sm:$0xf]
    %v1401 = vld [vmem:[%s5 + $0x18] sm:$0xf]
    %v1402 = vld [vmem:[%s5 + $0x1c] sm:$0xf]
    %v1403 = vld [vmem:[%s5 + $0x20] sm:$0xf]
    %v1404 = vld [vmem:[%s5 + $0x24] sm:$0xf]
    %v1405 = vld [vmem:[%s5 + $0x28] sm:$0xf]
    %v1406 = vld [vmem:[%s5 + $0x2c] sm:$0xf]
    %v1407 = vld [vmem:[%s5 + $0x30] sm:$0xf]
    %v1408 = vld [vmem:[%s5 + $0x34] sm:$0xf]
    %v1409 = vld [vmem:[%s5 + $0x38] sm:$0xf]
    %v1410 = vld [vmem:[%s5 + $0x3c] sm:$0xf]
    %v1411 = vld [vmem:[%s5 + $0x40] sm:$0xf]
    %v1412 = vld [vmem:[%s5 + $0x44] sm:$0xf]
    %v1413 = vld [vmem:[%s5 + $0x48] sm:$0xf]
    %v1414 = vld [vmem:[%s5 + $0x4c] sm:$0xf]
    %v1415 = vld [vmem:[%s5 + $0x50] sm:$0xf]
    %v1416 = vld [vmem:[%s5 + $0x54] sm:$0xf]
    %v1417 = vld [vmem:[%s5 + $0x58] sm:$0xf]
    %v1418 = vld [vmem:[%s5 + $0x5c] sm:$0xf]
    %v1419 = vld [vmem:[%s5 + $0x60] sm:$0xf]
    %v1420 = vld [vmem:[%s5 + $0x64] sm:$0xf]
    %v1421 = vld [vmem:[%s5 + $0x68] sm:$0xf]
    %v1422 = vld [vmem:[%s5 + $0x6c] sm:$0xf]
    %v1423 = vld [vmem:[%s5 + $0x70] sm:$0xf]
    %v1424 = vld [vmem:[%s5 + $0x74] sm:$0xf]
    %v1425 = vld [vmem:[%s5 + $0x78] sm:$0xf]
    %v1426 = vld [vmem:[%s5 + $0x7c] sm:$0xf]
    %v1427 = vld [vmem:[%s5 + $0x80] sm:$0xf]
    %v1428 = vld [vmem:[%s5 + $0x84] sm:$0xf]
    %v1429 = vld [vmem:[%s5 + $0x88] sm:$0xf]
    %v1430 = vld [vmem:[%s5 + $0x8c] sm:$0xf]
    %v1431 = vld [vmem:[%s5 + $0x90] sm:$0xf]
    %v1432 = vld [vmem:[%s5 + $0x94] sm:$0xf]
    %v1433 = vld [vmem:[%s5 + $0x98] sm:$0xf]
    %v1434 = vld [vmem:[%s5 + $0x9c] sm:$0xf]
    %v1435 = vld [vmem:[%s5 + $0xa0] sm:$0xf]
    %v1436 = vld [vmem:[%s5 + $0xa4] sm:$0xf]
    %v1437 = vld [vmem:[%s5 + $0xa8] sm:$0xf]
    %v1438 = vld [vmem:[%s5 + $0xac] sm:$0xf]
    %v1439 = vld [vmem:[%s5 + $0xb0] sm:$0xf]
    %v1440 = vld [vmem:[%s5 + $0xb4] sm:$0xf]
    %v1441 = vld [vmem:[%s5 + $0xb8] sm:$0xf]
    %v1442 = vld [vmem:[%s5 + $0xbc] sm:$0xf]
    %v1443 = vld [vmem:[%s5 + $0xc0] sm:$0xf]
    %v1444 = vld [vmem:[%s5 + $0xc4] sm:$0xf]
    %v1445 = vld [vmem:[%s5 + $0xc8] sm:$0xf]
    %v1446 = vld [vmem:[%s5 + $0xcc] sm:$0xf]
    %v1447 = vld [vmem:[%s5 + $0xd0] sm:$0xf]
    %v1448 = vld [vmem:[%s5 + $0xd4] sm:$0xf]
    %v1449 = vld [vmem:[%s5 + $0xd8] sm:$0xf]
    %v1450 = vld [vmem:[%s5 + $0xdc] sm:$0xf]
    %v1451 = vld [vmem:[%s5 + $0xe0] sm:$0xf]
    %v1452 = vld [vmem:[%s5 + $0xe4] sm:$0xf]
    %v1453 = vld [vmem:[%s5 + $0xe8] sm:$0xf]
    %v1454 = vld [vmem:[%s5 + $0xec] sm:$0xf]
    %v1455 = vld [vmem:[%s5 + $0xf0] sm:$0xf]
    %v1456 = vld [vmem:[%s5 + $0xf4] sm:$0xf]
    %v1457 = vld [vmem:[%s5 + $0xf8] sm:$0xf]
    %v1458 = vld [vmem:[%s5 + $0xfc] sm:$0xf]
    %v1523 = vunpack.c.l.b16 %v1395
    %v1524 = vunpack.c.l.b16 %v1396
    %v1525 = vunpack.c.l.b16 %v1397
    %v1526 = vunpack.c.l.b16 %v1398
    %v1527 = vunpack.c.l.b16 %v1399
    %v1528 = vunpack.c.l.b16 %v1400
    %v1529 = vunpack.c.l.b16 %v1401
    %v1530 = vunpack.c.l.b16 %v1402
    %v1531 = vunpack.c.l.b16 %v1403
    %v1532 = vunpack.c.l.b16 %v1404
    %v1533 = vunpack.c.l.b16 %v1405
    %v1534 = vunpack.c.l.b16 %v1406
    %v1535 = vunpack.c.l.b16 %v1407
    %v1536 = vunpack.c.l.b16 %v1408
    %v1537 = vunpack.c.l.b16 %v1409
    %v1538 = vunpack.c.l.b16 %v1410
    %v1539 = vunpack.c.l.b16 %v1411
    %v1540 = vunpack.c.l.b16 %v1412
    %v1541 = vunpack.c.l.b16 %v1413
    %v1542 = vunpack.c.l.b16 %v1414
    %v1543 = vunpack.c.l.b16 %v1415
    %v1544 = vunpack.c.l.b16 %v1416
    %v1545 = vunpack.c.l.b16 %v1417
    %v1546 = vunpack.c.l.b16 %v1418
    %v1547 = vunpack.c.l.b16 %v1419
    %v1548 = vunpack.c.l.b16 %v1420
    %v1549 = vunpack.c.l.b16 %v1421
    %v1550 = vunpack.c.l.b16 %v1422
    %v1551 = vunpack.c.l.b16 %v1423
    %v1552 = vunpack.c.l.b16 %v1424
    %v1553 = vunpack.c.l.b16 %v1425
    %v1554 = vunpack.c.l.b16 %v1426
    %v1555 = vunpack.c.l.b16 %v1427
    %v1556 = vunpack.c.l.b16 %v1428
    %v1557 = vunpack.c.l.b16 %v1429
    %v1558 = vunpack.c.l.b16 %v1430
    %v1559 = vunpack.c.l.b16 %v1431
    %v1560 = vunpack.c.l.b16 %v1432
    %v1561 = vunpack.c.l.b16 %v1433
    %v1562 = vunpack.c.l.b16 %v1434
    %v1563 = vunpack.c.l.b16 %v1435
    %v1564 = vunpack.c.l.b16 %v1436
    %v1565 = vunpack.c.l.b16 %v1437
    %v1566 = vunpack.c.l.b16 %v1438
    %v1567 = vunpack.c.l.b16 %v1439
    %v1568 = vunpack.c.l.b16 %v1440
    %v1569 = vunpack.c.l.b16 %v1441
    %v1570 = vunpack.c.l.b16 %v1442
    %v1571 = vunpack.c.l.b16 %v1443
    %v1572 = vunpack.c.l.b16 %v1444
    %v1573 = vunpack.c.l.b16 %v1445
    %v1574 = vunpack.c.l.b16 %v1446
    %v1575 = vunpack.c.l.b16 %v1447
    %v1576 = vunpack.c.l.b16 %v1448
    %v1577 = vunpack.c.l.b16 %v1449
    %v1578 = vunpack.c.l.b16 %v1450
    %v1579 = vunpack.c.l.b16 %v1451
    %v1580 = vunpack.c.l.b16 %v1452
    %v1581 = vunpack.c.l.b16 %v1453
    %v1582 = vunpack.c.l.b16 %v1454
    %v1583 = vunpack.c.l.b16 %v1455
    %v1584 = vunpack.c.l.b16 %v1456
    %v1585 = vunpack.c.l.b16 %v1457
    %v1586 = vunpack.c.l.b16 %v1458
    %v1587 = vpack.c.b16 %v1524, %v1523
    %v1588 = vpack.c.b16 %v1526, %v1525
    %v1589 = vpack.c.b16 %v1528, %v1527
    %v1590 = vpack.c.b16 %v1530, %v1529
    %v1591 = vpack.c.b16 %v1532, %v1531
    %v1592 = vpack.c.b16 %v1534, %v1533
    %v1593 = vpack.c.b16 %v1536, %v1535
    %v1594 = vpack.c.b16 %v1538, %v1537
    %v1595 = vpack.c.b16 %v1540, %v1539
    %v1596 = vpack.c.b16 %v1542, %v1541
    %v1597 = vpack.c.b16 %v1544, %v1543
    %v1598 = vpack.c.b16 %v1546, %v1545
    %v1599 = vpack.c.b16 %v1548, %v1547
    %v1600 = vpack.c.b16 %v1550, %v1549
    %v1601 = vpack.c.b16 %v1552, %v1551
    %v1602 = vpack.c.b16 %v1554, %v1553
    %v1603 = vpack.c.b16 %v1556, %v1555
    %v1604 = vpack.c.b16 %v1558, %v1557
    %v1605 = vpack.c.b16 %v1560, %v1559
    %v1606 = vpack.c.b16 %v1562, %v1561
    %v1607 = vpack.c.b16 %v1564, %v1563
    %v1608 = vpack.c.b16 %v1566, %v1565
    %v1609 = vpack.c.b16 %v1568, %v1567
    %v1610 = vpack.c.b16 %v1570, %v1569
    %v1611 = vpack.c.b16 %v1572, %v1571
    %v1612 = vpack.c.b16 %v1574, %v1573
    %v1613 = vpack.c.b16 %v1576, %v1575
    %v1614 = vpack.c.b16 %v1578, %v1577
    %v1615 = vpack.c.b16 %v1580, %v1579
    %v1616 = vpack.c.b16 %v1582, %v1581
    %v1617 = vpack.c.b16 %v1584, %v1583
    %v1618 = vpack.c.b16 %v1586, %v1585
    %1651 = vmatprep.subr.bf16.mxu0 0
    %1652 = vmatpush1.bf16.msra.mxu0 %v1587
    %1653 = vmatprep.subr.bf16.mxu0 0
    %1654 = vmatpush1.bf16.msra.mxu0 %v1588
    %1655 = vmatprep.subr.bf16.mxu0 0
    %1656 = vmatpush1.bf16.msra.mxu0 %v1589
    %1657 = vmatprep.subr.bf16.mxu0 0
    %1658 = vmatpush1.bf16.msra.mxu0 %v1590
    %1659 = vmatprep.subr.bf16.mxu0 0
    %1660 = vmatpush1.bf16.msra.mxu0 %v1591
    %1661 = vmatprep.subr.bf16.mxu0 0
    %1662 = vmatpush1.bf16.msra.mxu0 %v1592
    %1663 = vmatprep.subr.bf16.mxu0 0
    %1664 = vmatpush1.bf16.msra.mxu0 %v1593
    %1665 = vmatprep.subr.bf16.mxu0 0
    %1666 = vmatpush1.bf16.msra.mxu0 %v1594
    %1667 = vmatprep.subr.bf16.mxu0 0
    %1668 = vmatpush1.bf16.msra.mxu0 %v1595
    %1669 = vmatprep.subr.bf16.mxu0 0
    %1670 = vmatpush1.bf16.msra.mxu0 %v1596
    %1671 = vmatprep.subr.bf16.mxu0 0
    %1672 = vmatpush1.bf16.msra.mxu0 %v1597
    %1673 = vmatprep.subr.bf16.mxu0 0
    %1674 = vmatpush1.bf16.msra.mxu0 %v1598
    %1675 = vmatprep.subr.bf16.mxu0 0
    %1676 = vmatpush1.bf16.msra.mxu0 %v1599
    %1677 = vmatprep.subr.bf16.mxu0 0
    %1678 = vmatpush1.bf16.msra.mxu0 %v1600
    %1679 = vmatprep.subr.bf16.mxu0 0
    %1680 = vmatpush1.bf16.msra.mxu0 %v1601
    %1681 = vmatprep.subr.bf16.mxu0 0
    %1682 = vmatpush1.bf16.msra.mxu0 %v1602
    %1683 = vmatprep.mubr.bf16.mxu0 %v1392
    %1684 = vmatmul.mubr.bf16.gmra.mrb[0].mxu0 %v1391
    %v1685 = vpop.f32.mrb[0].mxu0
    %v1686 = vadd.f32 %v52, %v1685
    %v1687 = vpop.f32.mrb[0].mxu0
    %v1688 = vpop.f32.mrb[0].mxu0
    %v1689 = vpop.f32.mrb[0].mxu0
    %1690 = vdwg.mxu0
    %1691 = vmatprep.subr.bf16.mxu0 0
    %1692 = vmatpush1.bf16.msra.mxu0 %v1603
    %1693 = vmatprep.subr.bf16.mxu0 0
    %1694 = vmatpush1.bf16.msra.mxu0 %v1604
    %1695 = vmatprep.subr.bf16.mxu0 0
    %1696 = vmatpush1.bf16.msra.mxu0 %v1605
    %1697 = vmatprep.subr.bf16.mxu0 0
    %1698 = vmatpush1.bf16.msra.mxu0 %v1606
    %1699 = vmatprep.subr.bf16.mxu0 0
    %1700 = vmatpush1.bf16.msra.mxu0 %v1607
    %1701 = vmatprep.subr.bf16.mxu0 0
    %1702 = vmatpush1.bf16.msra.mxu0 %v1608
    %1703 = vmatprep.subr.bf16.mxu0 0
    %1704 = vmatpush1.bf16.msra.mxu0 %v1609
    %1705 = vmatprep.subr.bf16.mxu0 0
    %1706 = vmatpush1.bf16.msra.mxu0 %v1610
    %1707 = vmatprep.subr.bf16.mxu0 0
    %1708 = vmatpush1.bf16.msra.mxu0 %v1611
    %1709 = vmatprep.subr.bf16.mxu0 0
    %1710 = vmatpush1.bf16.msra.mxu0 %v1612
    %1711 = vmatprep.subr.bf16.mxu0 0
    %1712 = vmatpush1.bf16.msra.mxu0 %v1613
    %1713 = vmatprep.subr.bf16.mxu0 0
    %1714 = vmatpush1.bf16.msra.mxu0 %v1614
    %1715 = vmatprep.subr.bf16.mxu0 0
    %1716 = vmatpush1.bf16.msra.mxu0 %v1615
    %1717 = vmatprep.subr.bf16.mxu0 0
    %1718 = vmatpush1.bf16.msra.mxu0 %v1616
    %1719 = vmatprep.subr.bf16.mxu0 0
    %1720 = vmatpush1.bf16.msra.mxu0 %v1617
    %1721 = vmatprep.subr.bf16.mxu0 0
    %1722 = vmatpush1.bf16.msra.mxu0 %v1618
    %1723 = vmatprep.mubr.bf16.mxu0 %v1394
    %1724 = vmatmul.mubr.bf16.gmra.mrb[0].mxu0 %v1393
    %v1725 = vpop.f32.mrb[0].mxu0
    %v1726 = vadd.f32 %v1686, %v1725
    %v1727 = vpop.f32.mrb[0].mxu0
    %v1728 = vpop.f32.mrb[0].mxu0
    %v1729 = vpop.f32.mrb[0].mxu0
    %1730 = vdwg.mxu0
    %vm1731 = vcmask 15360
    %1732 = vst.msk [vmem:[%s7] sm:$0xff] %vm1731, %v1726
    // Predicated region
    $region34: #{tpu_custom_call.1} parent=1 // pred_check
      _
    $region35: #{tpu_custom_call.1} parent=1 // pred_check_branch
      %1734 = sbr.rel (0) target = $region37
    $region36: #{tpu_custom_call.1} parent=1 // pred_region
      _
    $region37: #{tpu_custom_call.1} parent=1 // pred_fallthru
      _
    // Predicated region
    $region38: #{tpu_custom_call.1} parent=1 // pred_check
      _
    $region39: #{tpu_custom_call.1} parent=1 // pred_check_branch
      %1736 = sbr.rel (0) target = $region41
    $region40: #{tpu_custom_call.1} parent=1 // pred_region
      _
    $region41: #{tpu_custom_call.1} parent=1 // pred_fallthru
      _
    %1737 = vsyncpa [#allocation3], 1

</llo_original>
